<compile_context>
chip_gen: v6e
topology: v6e:2x2x1
jax: 0.10.0
libtpu: 0.0.40
codegen_flags: <defaults>
</compile_context>

<pallas_src>
import functools

import jax
import jax.numpy as jnp
from jax.experimental import pallas as pl
from jax.experimental.pallas import tpu as pltpu


def _round_up(v, m):
    return ((v + m - 1) // m) * m


def _stacked_gcn_kernel(a_ref, x_hbm, w_ref, b_ref, ndst_ref, nsrc_ref,
                        o_ref, xbuf0, xbuf1, *, tm):
    """Fused k_hop GraphConv stack.

    grid = (k_hop, n_row_tiles); layer axis outermost (sequential dependency).
      a_ref    : (tm, N_pad)     bf16/int8  row tile of the 0/1 adjacency
      x_hbm    : (N_pad, H_pad)  bf16       pre-scaled X (HBM, copied once)
      w_ref    : (H_pad, H_pad)  bf16       weight of the current layer
      b_ref    : (1, H_pad)      f32        bias of the current layer
      ndst_ref : (tm, 1)         f32        D_dst^{-1/2} for this row tile
      nsrc_ref : (tm, 1)         f32        D_src^{-1/2} for this row tile
      o_ref    : (tm, H_pad)     bf16       output row tile (last layer only)
      xbuf0/1  : (N_pad, H_pad)  bf16       resident activation double-buffer
                                            (values stored pre-scaled by nsrc)
    """
    l = pl.program_id(0)
    i = pl.program_id(1)
    n_layers = pl.num_programs(0)
    row_start = pl.multiple_of(i * tm, tm)

    # One-time: stage the (already D_src^{-1/2}-scaled) input features into the
    # scratch that even layers read.  The grid runs strictly sequentially with
    # the layer axis outermost, so this completes before any layer-0 read.
    @pl.when(jnp.logical_and(l == 0, i == 0))
    def _():
        pltpu.sync_copy(x_hbm, xbuf1)

    def layer_body(src_ref, dst_ref):
        # Aggregate: (tm, N_pad) @ (N_pad, H_pad) on the MXU, f32 accumulation.
        # astype is a no-op when A is already bf16 (resident case).
        a = a_ref[...].astype(jnp.bfloat16)
        agg = jnp.dot(a, src_ref[...], preferred_element_type=jnp.float32)
        # Destination-degree norm: one (tm,1) broadcast multiply on the VPU.
        agg = agg * ndst_ref[...]
        # Project in bf16 (f32 accumulation) + bias.
        out = jnp.dot(agg.astype(jnp.bfloat16), w_ref[...],
                      preferred_element_type=jnp.float32)
        out = out + b_ref[...]

        # Intermediate layers: ReLU, pre-scale by D_src^{-1/2} for the NEXT
        # layer's aggregation, keep resident in VMEM.  Padded rows get nsrc=0,
        # so the padded part of the scratch stays exactly zero.
        @pl.when(l < n_layers - 1)
        def _():
            h = jnp.maximum(out, 0.0) * nsrc_ref[...]
            dst_ref[pl.ds(row_start, tm), :] = h.astype(dst_ref.dtype)

        # Last layer: no ReLU, write the output tile (only layer that stores).
        @pl.when(l == n_layers - 1)
        def _():
            o_ref[...] = out.astype(o_ref.dtype)

    # Activation double-buffer across layers:
    #   even layers (incl. layer 0): read xbuf1, write xbuf0
    #   odd  layers                : read xbuf0, write xbuf1
    is_even = (l % 2) == 0

    @pl.when(is_even)
    def _():
        layer_body(xbuf1, xbuf0)

    @pl.when(jnp.logical_not(is_even))
    def _():
        layer_body(xbuf0, xbuf1)


def init_stacked_gcn_params(key, hidden_dim, k_hop):
    """Deterministic parameter init (Xavier-uniform weights, zero bias)."""
    params = []
    for _ in range(k_hop):
        key, wk = jax.random.split(key)
        limit = (6.0 / (hidden_dim + hidden_dim)) ** 0.5
        w = jax.random.uniform(wk, (hidden_dim, hidden_dim), jnp.float32,
                               minval=-limit, maxval=limit)
        b = jnp.zeros((hidden_dim,), jnp.float32)
        params.append((w, b))
    return params


def stacked_gcn_forward(adj, x, params):
    """adj: (N, N) dense adjacency with adj[dst, src] = 1.  x: (N, H)."""
    N, H = x.shape
    k_hop = len(params)

    # ---- degree norms (DGL clamp: degree >= 1) ----
    adj = adj.astype(jnp.float32)
    out_deg = jnp.maximum(jnp.sum(adj, axis=0), 1.0)   # source out-degrees
    in_deg = jnp.maximum(jnp.sum(adj, axis=1), 1.0)    # destination in-degrees
    norm_src = out_deg ** -0.5                          # (N,)
    norm_dst = in_deg ** -0.5                           # (N,)

    # ---- TPU-generation-aware VMEM budget ----
    try:
        vmem_cap = int(getattr(pltpu.get_tpu_info(), "vmem_capacity_bytes",
                               64 * 2 ** 20))
    except Exception:  # pragma: no cover - conservative fallback (v7x size)
        vmem_cap = 64 * 2 ** 20
    budget = int(vmem_cap * 0.80)          # tile-selection budget
    vmem_limit = int(vmem_cap * 0.90)      # compiler cap (headroom kept)

    H_pad = _round_up(H, 128)
    N_pad0 = _round_up(N, 128)

    def need_bytes(n_pad, tm, a_itemsize):
        need = 2 * n_pad * H_pad * 2                 # two activation scratches (bf16)
        need += 2 * H_pad * H_pad * 2                # W[l], bf16, double-buffered
        need += 2 * 8 * H_pad * 4                    # bias tile, f32
        need += 2 * tm * n_pad * a_itemsize          # A row tiles, double-buffered
        need += 2 * tm * H_pad * 2                   # output tiles, bf16
        need += 4 * tm * 512                         # (tm,1) f32 norm tiles (x2 arrays)
        need += 3 * tm * H_pad * 4                   # f32 intermediates (agg/out/h)
        if a_itemsize == 1:
            need += tm * n_pad * 2                   # in-kernel bf16 upcast of A tile
        return need

    if need_bytes(N_pad0, N_pad0, 2) <= budget:
        # A fits resident: bf16, single row tile, DMA'd from HBM exactly once.
        N_pad, tm, a_dtype = N_pad0, N_pad0, jnp.bfloat16
    else:
        # Stream A as int8 row tiles (halves the k_hop-times-re-streamed HBM
        # bytes); pick the largest tile that fits this generation's VMEM.
        N_pad, tm, a_dtype = N_pad0, 128, jnp.int8
        for cand in (512, 256, 128):
            n_pad_c = _round_up(N, cand)
            if need_bytes(n_pad_c, cand, 1) <= budget:
                N_pad, tm, a_dtype = n_pad_c, cand, jnp.int8
                break
    n_row_tiles = N_pad // tm

    # ---- pad / pack inputs ----
    a_p = jnp.zeros((N_pad, N_pad), a_dtype)
    a_p = a_p.at[:N, :N].set(adj.astype(a_dtype))     # exact 0/1 edge weights

    x_scaled = x.astype(jnp.float32) * norm_src[:, None]   # fold D_src^-1/2 once
    x_p = jnp.zeros((N_pad, H_pad), jnp.bfloat16)
    x_p = x_p.at[:N, :H].set(x_scaled.astype(jnp.bfloat16))

    w_p = jnp.zeros((k_hop, H_pad, H_pad), jnp.bfloat16)
    b_p = jnp.zeros((k_hop, 1, H_pad), jnp.float32)
    for li, (w, b) in enumerate(params):
        w_p = w_p.at[li, :H, :H].set(w.astype(jnp.bfloat16))
        b_p = b_p.at[li, 0, :H].set(b.reshape(-1).astype(jnp.float32))

    ndst_p = jnp.zeros((N_pad, 1), jnp.float32).at[:N, 0].set(norm_dst)
    nsrc_p = jnp.zeros((N_pad, 1), jnp.float32).at[:N, 0].set(norm_src)

    # ---- cost bookkeeping ----
    a_bytes = jnp.dtype(a_dtype).itemsize
    a_reads = 1 if n_row_tiles == 1 else k_hop
    flops = 2 * k_hop * (N_pad * N_pad * H_pad + N_pad * H_pad * H_pad)
    bytes_accessed = (a_reads * N_pad * N_pad * a_bytes
                      + N_pad * H_pad * 2
                      + k_hop * (H_pad * H_pad * 2 + H_pad * 4)
                      + k_hop * 2 * N_pad * 4
                      + (k_hop if n_row_tiles > 1 else 1) * N_pad * H_pad * 2)

    kernel = functools.partial(_stacked_gcn_kernel, tm=tm)

    grid_spec = pltpu.PrefetchScalarGridSpec(
        num_scalar_prefetch=0,
        grid=(k_hop, n_row_tiles),
        in_specs=[
            pl.BlockSpec((tm, N_pad), lambda l, i: (i, 0)),              # A tile
            pl.BlockSpec(memory_space=pl.ANY),                           # X (HBM)
            pl.BlockSpec((None, H_pad, H_pad), lambda l, i: (l, 0, 0)),  # W[l]
            pl.BlockSpec((None, 1, H_pad), lambda l, i: (l, 0, 0)),      # b[l]
            pl.BlockSpec((tm, 1), lambda l, i: (i, 0)),                  # D_dst^-1/2
            pl.BlockSpec((tm, 1), lambda l, i: (i, 0)),                  # D_src^-1/2
        ],
        out_specs=pl.BlockSpec((tm, H_pad), lambda l, i: (i, 0)),
        scratch_shapes=[
            pltpu.VMEM((N_pad, H_pad), jnp.bfloat16),   # xbuf0 (even layers write)
            pltpu.VMEM((N_pad, H_pad), jnp.bfloat16),   # xbuf1 (holds X; odd write)
        ],
    )

    out = pl.pallas_call(
        kernel,
        out_shape=jax.ShapeDtypeStruct((N_pad, H_pad), jnp.bfloat16),
        grid_spec=grid_spec,
        compiler_params=pltpu.CompilerParams(
            # Both axes sequential: layer l+1 reads every row layer l wrote to a
            # core-private VMEM scratch, so the row-tile axis must not be
            # megacore-sharded.  (v7x dual-TC would need VMEM_SHARED + barrier.)
            dimension_semantics=("arbitrary", "arbitrary"),
            vmem_limit_bytes=vmem_limit,
        ),
        cost_estimate=pl.CostEstimate(
            flops=int(flops), transcendentals=0,
            bytes_accessed=int(bytes_accessed)),
    )(a_p, x_p, w_p, b_p, ndst_p, nsrc_p)

    return out[:N, :H].astype(jnp.float32)


def _stacked_gcn_reference(adj, x, params):
    """Pure-JAX f32 reference (DGL GraphConv norm='both')."""
    adj = adj.astype(jnp.float32)
    out_deg = jnp.maximum(jnp.sum(adj, axis=0), 1.0)
    in_deg = jnp.maximum(jnp.sum(adj, axis=1), 1.0)
    norm_src = (out_deg ** -0.5)[:, None]
    norm_dst = (in_deg ** -0.5)[:, None]
    k_hop = len(params)
    h = x.astype(jnp.float32)
    for layer_idx, (w, b) in enumerate(params):
        agg = (adj @ (h * norm_src)) * norm_dst
        h = agg @ w + b.reshape(1, -1)
        if layer_idx < k_hop - 1:
            h = jnp.maximum(h, 0.0)
    return h


if __name__ == "__main__":
    N = 16          # number of graph nodes
    HIDDEN = 32     # hidden_dim
    K_HOP = 3       # k_hop

    key = jax.random.PRNGKey(0)
    k_adj, k_feat, k_param = jax.random.split(key, 3)

    # Random sparse-ish graph as a dense adjacency (dst, src); no self-loops.
    adj = jax.random.bernoulli(k_adj, p=0.3, shape=(N, N)).astype(jnp.float32)
    adj = adj * (1.0 - jnp.eye(N, dtype=jnp.float32))

    x = jax.random.normal(k_feat, (N, HIDDEN), dtype=jnp.float32)
    params = init_stacked_gcn_params(k_param, HIDDEN, K_HOP)

    out = stacked_gcn_forward(adj, x, params)
    jax.block_until_ready(out)
    assert out.shape == (N, HIDDEN)

    # Loose tolerance: activations / weights / output are bf16 in-kernel
    # (all matmuls accumulate in f32).
    ref = _stacked_gcn_reference(adj, x, params)
    max_err = float(jnp.max(jnp.abs(out - ref)))
    tol = 0.05 * (1.0 + float(jnp.max(jnp.abs(ref))))
    assert max_err < tol, f"max_err={max_err} tol={tol}"

    print("KERNEL_OK")
</pallas_src>

<mosaic_0001>
module attributes {stable_mosaic.version = 11 : i64} {
  func.func @_stacked_gcn_kernel(%arg0: i32, %arg1: i32, %arg2: memref<128x128xbf16, #tpu.memory_space<vmem>>, %arg3: memref<128x128xbf16, #tpu.memory_space<any>>, %arg4: memref<1x128x128xbf16, #tpu.memory_space<vmem>>, %arg5: memref<1x1x128xf32, #tpu.memory_space<vmem>>, %arg6: memref<128x1xf32, #tpu.memory_space<vmem>>, %arg7: memref<128x1xf32, #tpu.memory_space<vmem>>, %arg8: memref<128x128xbf16, #tpu.memory_space<vmem>>, %arg9: memref<128x128xbf16, #tpu.memory_space<vmem>>, %arg10: memref<128x128xbf16, #tpu.memory_space<vmem>>) attributes {dimension_semantics = [#tpu.dimension_semantics<arbitrary>, #tpu.dimension_semantics<arbitrary>], iteration_bounds = array<i64: 3, 1>, scalar_prefetch = 0 : i64, scratch_operands = 2 : i64, tpu.core_type = #tpu.core_type<tc>, window_params = [{transform_indices = @transform_0, window_bounds = array<i64: 128, 128>}, {}, {transform_indices = @transform_2, window_bounds = array<i64: 1, 128, 128>}, {transform_indices = @transform_3, window_bounds = array<i64: 1, 1, 128>}, {transform_indices = @transform_4, window_bounds = array<i64: 128, 1>}, {transform_indices = @transform_5, window_bounds = array<i64: 128, 1>}, {transform_indices = @transform_6, window_bounds = array<i64: 128, 128>}]} {
    %c128_i32 = arith.constant 128 : i32
    %0 = arith.muli %arg1, %c128_i32 : i32
    %1 = tpu.assume_multiple %0, 128 : i32
    %c0_i32 = arith.constant 0 : i32
    %2 = arith.cmpi eq, %arg0, %c0_i32 : i32
    %c0_i32_0 = arith.constant 0 : i32
    %3 = arith.cmpi eq, %arg1, %c0_i32_0 : i32
    %4 = arith.andi %2, %3 : i1
    %5 = arith.extui %4 : i1 to i32
    %c0_i32_1 = arith.constant 0 : i32
    %6 = arith.cmpi ne, %5, %c0_i32_1 : i32
    scf.if %6 {
      "tpu.region"() ({
        %23 = tpu.sem_alloc : memref<!tpu.dma_semaphore, #tpu.memory_space<semaphore_mem>>
        tpu.enqueue_dma source(%arg3 : memref<128x128xbf16, #tpu.memory_space<any>>) target(%arg10 : memref<128x128xbf16, #tpu.memory_space<vmem>>) target_semaphore(%23 : memref<!tpu.dma_semaphore, #tpu.memory_space<semaphore_mem>>)
        tpu.wait_dma2 semaphore(%23 : memref<!tpu.dma_semaphore, #tpu.memory_space<semaphore_mem>>) src(%arg3 : memref<128x128xbf16, #tpu.memory_space<any>>) dst(%arg10 : memref<128x128xbf16, #tpu.memory_space<vmem>>)
        tpu.yield
      }) : () -> ()
    } else {
    }
    %c2_i32 = arith.constant 2 : i32
    %c0_i32_2 = arith.constant 0 : i32
    %7 = arith.cmpi eq, %c2_i32, %c0_i32_2 : i32
    %c1_i32 = arith.constant 1 : i32
    %8 = arith.select %7, %c1_i32, %c2_i32 : i32
    %9 = arith.remsi %arg0, %8 : i32
    %c0_i32_3 = arith.constant 0 : i32
    %10 = arith.cmpi ne, %9, %c0_i32_3 : i32
    %c0_i32_4 = arith.constant 0 : i32
    %11 = arith.cmpi slt, %9, %c0_i32_4 : i32
    %c0_i32_5 = arith.constant 0 : i32
    %12 = arith.cmpi slt, %8, %c0_i32_5 : i32
    %13 = arith.xori %11, %12 : i1
    %14 = arith.andi %13, %10 : i1
    %15 = arith.addi %9, %8 : i32
    %16 = arith.select %14, %15, %9 : i32
    %c0_i32_6 = arith.constant 0 : i32
    %17 = arith.cmpi eq, %16, %c0_i32_6 : i32
    %18 = arith.extui %17 : i1 to i32
    %c0_i32_7 = arith.constant 0 : i32
    %19 = arith.cmpi ne, %18, %c0_i32_7 : i32
    scf.if %19 {
      %c0 = arith.constant 0 : index
      %c0_9 = arith.constant 0 : index
      %23 = vector.load %arg2[%c0, %c0_9] : memref<128x128xbf16, #tpu.memory_space<vmem>>, vector<128x128xbf16>
      %c0_10 = arith.constant 0 : index
      %c0_11 = arith.constant 0 : index
      %24 = vector.load %arg10[%c0_10, %c0_11] : memref<128x128xbf16, #tpu.memory_space<vmem>>, vector<128x128xbf16>
      %cst = arith.constant dense<0.000000e+00> : vector<128x128xf32>
      %25 = tpu.matmul %23, %24, %cst {dimension_numbers = #tpu.dot_dimension_numbers<[1], [0], [0], [1], [0, 0, 1, 1], [], []>} : vector<128x128xbf16>, vector<128x128xbf16>, vector<128x128xf32> -> vector<128x128xf32>
      %c0_12 = arith.constant 0 : index
      %c0_13 = arith.constant 0 : index
      %26 = vector.load %arg6[%c0_12, %c0_13] : memref<128x1xf32, #tpu.memory_space<vmem>>, vector<128x1xf32>
      %27 = vector.broadcast %26 : vector<128x1xf32> to vector<128x128xf32>
      %28 = arith.mulf %25, %27 : vector<128x128xf32>
      %29 = arith.truncf %28 : vector<128x128xf32> to vector<128x128xbf16>
      %c0_14 = arith.constant 0 : index
      %c0_15 = arith.constant 0 : index
      %c0_16 = arith.constant 0 : index
      %30 = vector.load %arg4[%c0_14, %c0_15, %c0_16] : memref<1x128x128xbf16, #tpu.memory_space<vmem>>, vector<1x128x128xbf16>
      %31 = vector.shape_cast %30 : vector<1x128x128xbf16> to vector<128x128xbf16>
      %cst_17 = arith.constant dense<0.000000e+00> : vector<128x128xf32>
      %32 = tpu.matmul %29, %31, %cst_17 {dimension_numbers = #tpu.dot_dimension_numbers<[1], [0], [0], [1], [0, 0, 1, 1], [], []>} : vector<128x128xbf16>, vector<128x128xbf16>, vector<128x128xf32> -> vector<128x128xf32>
      %c0_18 = arith.constant 0 : index
      %c0_19 = arith.constant 0 : index
      %c0_20 = arith.constant 0 : index
      %33 = vector.load %arg5[%c0_18, %c0_19, %c0_20] : memref<1x1x128xf32, #tpu.memory_space<vmem>>, vector<1x1x128xf32>
      %34 = vector.shape_cast %33 : vector<1x1x128xf32> to vector<1x128xf32>
      %35 = vector.broadcast %34 : vector<1x128xf32> to vector<128x128xf32>
      %36 = arith.addf %32, %35 : vector<128x128xf32>
      %c2_i32_21 = arith.constant 2 : i32
      %37 = arith.cmpi slt, %arg0, %c2_i32_21 : i32
      %38 = arith.extui %37 : i1 to i32
      %c0_i32_22 = arith.constant 0 : i32
      %39 = arith.cmpi ne, %38, %c0_i32_22 : i32
      scf.if %39 {
        %cst_25 = arith.constant 0.000000e+00 : f32
        %43 = vector.broadcast %cst_25 : f32 to vector<128x128xf32>
        %44 = arith.maximumf %36, %43 : vector<128x128xf32>
        %c0_26 = arith.constant 0 : index
        %c0_27 = arith.constant 0 : index
        %45 = vector.load %arg7[%c0_26, %c0_27] : memref<128x1xf32, #tpu.memory_space<vmem>>, vector<128x1xf32>
        %46 = vector.broadcast %45 : vector<128x1xf32> to vector<128x128xf32>
        %47 = arith.mulf %44, %46 : vector<128x128xf32>
        %48 = arith.truncf %47 : vector<128x128xf32> to vector<128x128xbf16>
        %49 = arith.index_cast %1 : i32 to index
        %c0_28 = arith.constant 0 : index
        %50 = vector.load %arg9[%49, %c0_28] : memref<128x128xbf16, #tpu.memory_space<vmem>>, vector<128x128xbf16>
        tpu.vector_store %arg9[%49, %c0_28], %48 {strides = array<i32>} : memref<128x128xbf16, #tpu.memory_space<vmem>>, vector<128x128xbf16>,
      } else {
      }
      %c2_i32_23 = arith.constant 2 : i32
      %40 = arith.cmpi eq, %arg0, %c2_i32_23 : i32
      %41 = arith.extui %40 : i1 to i32
      %c0_i32_24 = arith.constant 0 : i32
      %42 = arith.cmpi ne, %41, %c0_i32_24 : i32
      scf.if %42 {
        %43 = arith.truncf %36 : vector<128x128xf32> to vector<128x128xbf16>
        %c0_25 = arith.constant 0 : index
        %c0_26 = arith.constant 0 : index
        %44 = vector.load %arg8[%c0_25, %c0_26] : memref<128x128xbf16, #tpu.memory_space<vmem>>, vector<128x128xbf16>
        tpu.vector_store %arg8[%c0_25, %c0_26], %43 {strides = array<i32>} : memref<128x128xbf16, #tpu.memory_space<vmem>>, vector<128x128xbf16>,
      } else {
      }
    } else {
    }
    %true = arith.constant true
    %20 = arith.xori %17, %true : i1
    %21 = arith.extui %20 : i1 to i32
    %c0_i32_8 = arith.constant 0 : i32
    %22 = arith.cmpi ne, %21, %c0_i32_8 : i32
    scf.if %22 {
      %c0 = arith.constant 0 : index
      %c0_9 = arith.constant 0 : index
      %23 = vector.load %arg2[%c0, %c0_9] : memref<128x128xbf16, #tpu.memory_space<vmem>>, vector<128x128xbf16>
      %c0_10 = arith.constant 0 : index
      %c0_11 = arith.constant 0 : index
      %24 = vector.load %arg9[%c0_10, %c0_11] : memref<128x128xbf16, #tpu.memory_space<vmem>>, vector<128x128xbf16>
      %cst = arith.constant dense<0.000000e+00> : vector<128x128xf32>
      %25 = tpu.matmul %23, %24, %cst {dimension_numbers = #tpu.dot_dimension_numbers<[1], [0], [0], [1], [0, 0, 1, 1], [], []>} : vector<128x128xbf16>, vector<128x128xbf16>, vector<128x128xf32> -> vector<128x128xf32>
      %c0_12 = arith.constant 0 : index
      %c0_13 = arith.constant 0 : index
      %26 = vector.load %arg6[%c0_12, %c0_13] : memref<128x1xf32, #tpu.memory_space<vmem>>, vector<128x1xf32>
      %27 = vector.broadcast %26 : vector<128x1xf32> to vector<128x128xf32>
      %28 = arith.mulf %25, %27 : vector<128x128xf32>
      %29 = arith.truncf %28 : vector<128x128xf32> to vector<128x128xbf16>
      %c0_14 = arith.constant 0 : index
      %c0_15 = arith.constant 0 : index
      %c0_16 = arith.constant 0 : index
      %30 = vector.load %arg4[%c0_14, %c0_15, %c0_16] : memref<1x128x128xbf16, #tpu.memory_space<vmem>>, vector<1x128x128xbf16>
      %31 = vector.shape_cast %30 : vector<1x128x128xbf16> to vector<128x128xbf16>
      %cst_17 = arith.constant dense<0.000000e+00> : vector<128x128xf32>
      %32 = tpu.matmul %29, %31, %cst_17 {dimension_numbers = #tpu.dot_dimension_numbers<[1], [0], [0], [1], [0, 0, 1, 1], [], []>} : vector<128x128xbf16>, vector<128x128xbf16>, vector<128x128xf32> -> vector<128x128xf32>
      %c0_18 = arith.constant 0 : index
      %c0_19 = arith.constant 0 : index
      %c0_20 = arith.constant 0 : index
      %33 = vector.load %arg5[%c0_18, %c0_19, %c0_20] : memref<1x1x128xf32, #tpu.memory_space<vmem>>, vector<1x1x128xf32>
      %34 = vector.shape_cast %33 : vector<1x1x128xf32> to vector<1x128xf32>
      %35 = vector.broadcast %34 : vector<1x128xf32> to vector<128x128xf32>
      %36 = arith.addf %32, %35 : vector<128x128xf32>
      %c2_i32_21 = arith.constant 2 : i32
      %37 = arith.cmpi slt, %arg0, %c2_i32_21 : i32
      %38 = arith.extui %37 : i1 to i32
      %c0_i32_22 = arith.constant 0 : i32
      %39 = arith.cmpi ne, %38, %c0_i32_22 : i32
      scf.if %39 {
        %cst_25 = arith.constant 0.000000e+00 : f32
        %43 = vector.broadcast %cst_25 : f32 to vector<128x128xf32>
        %44 = arith.maximumf %36, %43 : vector<128x128xf32>
        %c0_26 = arith.constant 0 : index
        %c0_27 = arith.constant 0 : index
        %45 = vector.load %arg7[%c0_26, %c0_27] : memref<128x1xf32, #tpu.memory_space<vmem>>, vector<128x1xf32>
        %46 = vector.broadcast %45 : vector<128x1xf32> to vector<128x128xf32>
        %47 = arith.mulf %44, %46 : vector<128x128xf32>
        %48 = arith.truncf %47 : vector<128x128xf32> to vector<128x128xbf16>
        %49 = arith.index_cast %1 : i32 to index
        %c0_28 = arith.constant 0 : index
        %50 = vector.load %arg10[%49, %c0_28] : memref<128x128xbf16, #tpu.memory_space<vmem>>, vector<128x128xbf16>
        tpu.vector_store %arg10[%49, %c0_28], %48 {strides = array<i32>} : memref<128x128xbf16, #tpu.memory_space<vmem>>, vector<128x128xbf16>,
      } else {
      }
      %c2_i32_23 = arith.constant 2 : i32
      %40 = arith.cmpi eq, %arg0, %c2_i32_23 : i32
      %41 = arith.extui %40 : i1 to i32
      %c0_i32_24 = arith.constant 0 : i32
      %42 = arith.cmpi ne, %41, %c0_i32_24 : i32
      scf.if %42 {
        %43 = arith.truncf %36 : vector<128x128xf32> to vector<128x128xbf16>
        %c0_25 = arith.constant 0 : index
        %c0_26 = arith.constant 0 : index
        %44 = vector.load %arg8[%c0_25, %c0_26] : memref<128x128xbf16, #tpu.memory_space<vmem>>, vector<128x128xbf16>
        tpu.vector_store %arg8[%c0_25, %c0_26], %43 {strides = array<i32>} : memref<128x128xbf16, #tpu.memory_space<vmem>>, vector<128x128xbf16>,
      } else {
      }
    } else {
    }
    return
  }
  func.func @transform_0(%arg0: i32, %arg1: i32) -> (i32, i32) {
    %c0_i32 = arith.constant 0 : i32
    %c0_i32_0 = arith.constant 0 : i32
    return %arg1, %c0_i32 : i32, i32
  }
  func.func @transform_2(%arg0: i32, %arg1: i32) -> (i32, i32, i32) {
    %c0_i32 = arith.constant 0 : i32
    %c0_i32_0 = arith.constant 0 : i32
    %c0_i32_1 = arith.constant 0 : i32
    return %arg0, %c0_i32, %c0_i32_0 : i32, i32, i32
  }
  func.func @transform_3(%arg0: i32, %arg1: i32) -> (i32, i32, i32) {
    %c0_i32 = arith.constant 0 : i32
    %c0_i32_0 = arith.constant 0 : i32
    %c0_i32_1 = arith.constant 0 : i32
    return %arg0, %c0_i32, %c0_i32_0 : i32, i32, i32
  }
  func.func @transform_4(%arg0: i32, %arg1: i32) -> (i32, i32) {
    %c0_i32 = arith.constant 0 : i32
    %c0_i32_0 = arith.constant 0 : i32
    return %arg1, %c0_i32 : i32, i32
  }
  func.func @transform_5(%arg0: i32, %arg1: i32) -> (i32, i32) {
    %c0_i32 = arith.constant 0 : i32
    %c0_i32_0 = arith.constant 0 : i32
    return %arg1, %c0_i32 : i32, i32
  }
  func.func @transform_6(%arg0: i32, %arg1: i32) -> (i32, i32) {
    %c0_i32 = arith.constant 0 : i32
    %c0_i32_0 = arith.constant 0 : i32
    return %arg1, %c0_i32 : i32, i32
  }
}

</mosaic_0001>

<llo_original>
// kernel: tpu_custom_call.1
$region0: #{tpu_custom_call.1}
  #allocation0 [shape = 'u32[]', space=smem, size = 0x4, offset = 0x4, fixed_abs, tag = 'smem constant byte address 0x4 - core index']
  #allocation1 [shape = 'u32[144,128]{1,0:T(1,128)}', space=vmem, size = 0x12000, scoped, tag = 'internal scratch']
  #allocation2 [shape = 'bf16[128,128]{1,0:T(8,128)(2,1)}', space=vmem, size = 0x8000, scoped, tag = 'scratch operand']
  #allocation3 [shape = 'bf16[128,128]{1,0:T(8,128)(2,1)}', space=vmem, size = 0x8000, scoped, tag = 'scratch operand']
  #allocation7 [shape = 's32[]', space=sflag, size = 0x4, offset = 0, fixed_abs, tag = 'sflag constant byte address 0x0 - dummy sync flag']
  #allocation8 [shape = 's32[]', space=sflag, size = 0x4, offset = 0, fixed_abs, tag = 'sflag constant byte address 0x0 - dummy sync flag']
  #allocation9 [shape = 'u32[]', space=smem, size = 0x4, offset = 0x44, fixed_abs, tag = 'smem constant byte address 0x44 - assertion arg 0']
  #allocation10 [shape = 'u32[]', space=smem, size = 0x4, offset = 0x48, fixed_abs, tag = 'smem constant byte address 0x48 - assertion arg 1']
  %s0 = inlined_call_operand.vmem [shape: bf16[128,128], index: 0, kind: input, shape index: {}]
  %s1 = inlined_call_operand.hbm [shape: bf16[128,128], index: 1, kind: input, shape index: {}]
  %s2 = inlined_call_operand.vmem [shape: bf16[3,128,128], index: 2, kind: input, shape index: {}]
  %s3 = inlined_call_operand.vmem [shape: f32[3,1,128], index: 3, kind: input, shape index: {}]
  %s4 = inlined_call_operand.vmem [shape: f32[128,1], index: 4, kind: input, shape index: {}]
  %s5 = inlined_call_operand.vmem [shape: f32[128,1], index: 5, kind: input, shape index: {}]
  %s6 = inlined_call_operand.hbm [shape: bf16[128,128], index: 6, kind: output, shape index: {}]
  %s7 = sld [smem:[#allocation0]]
  $region86: #{tpu_custom_call.1} parent=0
    _
  %s9 = ssub.s32 1, %s7
  %s10 = scalar_select 0, %s9, %s7
  $region1: #{tpu_custom_call.1} parent=0
    #allocation4 [shape = 'u8[32768]{0}', space=vmem, size = 0x8000, scoped, tag = 'output window, operand 0, single buffered']
    #allocation5 [shape = 's32[2]{0}', space=sflag, size = 0x8, scoped, tag = 'scoped memory for tpu_custom_call.1']
    %11 = vsyncpa [#allocation5], 0
    loop: start=0, step=1, limit=5
    $region2: #{tpu_custom_call.1} parent=1 // loop_pre_header
      _
    $region3: #{tpu_custom_call.1} parent=1 // loop_header
      %s13 = sphi 0, %s17
      %p14 = scmp.ge.s32.totalorder %s13, 5
      %s20 = sphi 0, %s32
      %s21 = sphi 0, %s28
      %s22 = sphi 0, %s20
      %s23 = sphi 0, %s21
      %s24 = sphi 0, %s22
      %s25 = sphi 0, %s23
      %s35 = sphi 0, %s37
      %s38 = sphi 0, %s35
      %s39 = sphi 0, %s38
      %s55 = sphi 0, %s39
      %s61 = sphi 0, %s63
      %s64 = sphi 0, %s61
      %s65 = sphi 0, %s64
      %s81 = sphi 0, %s65
      %s87 = sphi 0, %s89
      %s90 = sphi 0, %s87
      %s91 = sphi 0, %s90
      %s107 = sphi 0, %s91
      %s113 = sphi 0, %s115
      %s116 = sphi 0, %s113
      %s117 = sphi 0, %s116
      %s133 = sphi 0, %s117
      %s139 = sphi 0, %s141
      %s142 = sphi 0, %s139
      %s143 = sphi 0, %s142
      %s159 = sphi 0, %s143
      %s165 = sphi 0, %s167
      %s168 = sphi 0, %s165
      %s169 = sphi 0, %s168
      %s185 = sphi 0, %s169
    $region4: #{tpu_custom_call.1} parent=1 // loop_header_branch
      %16 = sbr.rel (%p14) target = $region8
    $region5: #{tpu_custom_call.1} parent=1 // loop_body
      %s18 = ssub.s32 %s13, 1
      %s19 = ssub.s32 %s13, 2
      %s26 = sadd.s32 1, %s21
      %p27 = scmp.ge.s32.totalorder %s26, 1
      %s28 = scalar_select %p27, 0, %s26
      %s29 = sadd.s32 1, %s20
      %s30 = scalar_select %p27, %s29, %s20
      %p31 = scmp.ge.s32.totalorder %s30, 3
      %s32 = scalar_select %p31, 0, %s30
      %s33 = ssub.s32 %s21, %s28
      %p34 = scmp.eq.s32.totalorder %s33, 0
      %s36 = sadd.s32 %s35, 1
      %s37 = scalar_select %p34, %s35, %s36
      %p40 = pneg %p34
      %p41 = scmp.eq.s32.totalorder %s13, 2
      %p42 = por %p40, %p41
      %p43 = scmp.ne.s32.totalorder %s35, %s38
      %p44 = scmp.eq.s32.totalorder %s13, 0
      %p45 = por %p43, %p44
      %p46 = scmp.ne.s32.totalorder %s35, %s38
      %p47 = scmp.eq.s32.totalorder %s18, 2
      %p48 = por %p46, %p47
      %p49 = scmp.ne.s32.totalorder %s38, %s39
      %p50 = scmp.eq.s32.totalorder %s18, 0
      %p51 = por %p49, %p50
      %p52 = scmp.ne.s32.totalorder %s38, %s39
      %p53 = scmp.eq.s32.totalorder %s19, 2
      %p54 = por %p52, %p53
      %p56 = scmp.ne.s32.totalorder %s39, %s55
      %p57 = scmp.eq.s32.totalorder %s19, 0
      %p58 = por %p56, %p57
      %s59 = ssub.s32 %s20, %s32
      %p60 = scmp.eq.s32.totalorder %s59, 0
      %s62 = sadd.s32 %s61, 1
      %s63 = scalar_select %p60, %s61, %s62
      %p66 = pneg %p60
      %p67 = scmp.eq.s32.totalorder %s13, 2
      %p68 = por %p66, %p67
      %p69 = scmp.ne.s32.totalorder %s61, %s64
      %p70 = scmp.eq.s32.totalorder %s13, 0
      %p71 = por %p69, %p70
      %p72 = scmp.ne.s32.totalorder %s61, %s64
      %p73 = scmp.eq.s32.totalorder %s18, 2
      %p74 = por %p72, %p73
      %p75 = scmp.ne.s32.totalorder %s64, %s65
      %p76 = scmp.eq.s32.totalorder %s18, 0
      %p77 = por %p75, %p76
      %p78 = scmp.ne.s32.totalorder %s64, %s65
      %p79 = scmp.eq.s32.totalorder %s19, 2
      %p80 = por %p78, %p79
      %p82 = scmp.ne.s32.totalorder %s65, %s81
      %p83 = scmp.eq.s32.totalorder %s19, 0
      %p84 = por %p82, %p83
      %s85 = ssub.s32 %s20, %s32
      %p86 = scmp.eq.s32.totalorder %s85, 0
      %s88 = sadd.s32 %s87, 1
      %s89 = scalar_select %p86, %s87, %s88
      %p92 = pneg %p86
      %p93 = scmp.eq.s32.totalorder %s13, 2
      %p94 = por %p92, %p93
      %p95 = scmp.ne.s32.totalorder %s87, %s90
      %p96 = scmp.eq.s32.totalorder %s13, 0
      %p97 = por %p95, %p96
      %p98 = scmp.ne.s32.totalorder %s87, %s90
      %p99 = scmp.eq.s32.totalorder %s18, 2
      %p100 = por %p98, %p99
      %p101 = scmp.ne.s32.totalorder %s90, %s91
      %p102 = scmp.eq.s32.totalorder %s18, 0
      %p103 = por %p101, %p102
      %p104 = scmp.ne.s32.totalorder %s90, %s91
      %p105 = scmp.eq.s32.totalorder %s19, 2
      %p106 = por %p104, %p105
      %p108 = scmp.ne.s32.totalorder %s91, %s107
      %p109 = scmp.eq.s32.totalorder %s19, 0
      %p110 = por %p108, %p109
      %s111 = ssub.s32 %s21, %s28
      %p112 = scmp.eq.s32.totalorder %s111, 0
      %s114 = sadd.s32 %s113, 1
      %s115 = scalar_select %p112, %s113, %s114
      %p118 = pneg %p112
      %p119 = scmp.eq.s32.totalorder %s13, 2
      %p120 = por %p118, %p119
      %p121 = scmp.ne.s32.totalorder %s113, %s116
      %p122 = scmp.eq.s32.totalorder %s13, 0
      %p123 = por %p121, %p122
      %p124 = scmp.ne.s32.totalorder %s113, %s116
      %p125 = scmp.eq.s32.totalorder %s18, 2
      %p126 = por %p124, %p125
      %p127 = scmp.ne.s32.totalorder %s116, %s117
      %p128 = scmp.eq.s32.totalorder %s18, 0
      %p129 = por %p127, %p128
      %p130 = scmp.ne.s32.totalorder %s116, %s117
      %p131 = scmp.eq.s32.totalorder %s19, 2
      %p132 = por %p130, %p131
      %p134 = scmp.ne.s32.totalorder %s117, %s133
      %p135 = scmp.eq.s32.totalorder %s19, 0
      %p136 = por %p134, %p135
      %s137 = ssub.s32 %s21, %s28
      %p138 = scmp.eq.s32.totalorder %s137, 0
      %s140 = sadd.s32 %s139, 1
      %s141 = scalar_select %p138, %s139, %s140
      %p144 = pneg %p138
      %p145 = scmp.eq.s32.totalorder %s13, 2
      %p146 = por %p144, %p145
      %p147 = scmp.ne.s32.totalorder %s139, %s142
      %p148 = scmp.eq.s32.totalorder %s13, 0
      %p149 = por %p147, %p148
      %p150 = scmp.ne.s32.totalorder %s139, %s142
      %p151 = scmp.eq.s32.totalorder %s18, 2
      %p152 = por %p150, %p151
      %p153 = scmp.ne.s32.totalorder %s142, %s143
      %p154 = scmp.eq.s32.totalorder %s18, 0
      %p155 = por %p153, %p154
      %p156 = scmp.ne.s32.totalorder %s142, %s143
      %p157 = scmp.eq.s32.totalorder %s19, 2
      %p158 = por %p156, %p157
      %p160 = scmp.ne.s32.totalorder %s143, %s159
      %p161 = scmp.eq.s32.totalorder %s19, 0
      %p162 = por %p160, %p161
      %s163 = ssub.s32 %s21, %s28
      %p164 = scmp.eq.s32.totalorder %s163, 0
      %s166 = sadd.s32 %s165, 1
      %s167 = scalar_select %p164, %s165, %s166
      %p170 = pneg %p164
      %p171 = scmp.eq.s32.totalorder %s13, 2
      %p172 = por %p170, %p171
      %p173 = scmp.ne.s32.totalorder %s165, %s168
      %p174 = scmp.eq.s32.totalorder %s13, 0
      %p175 = por %p173, %p174
      %p176 = scmp.ne.s32.totalorder %s165, %s168
      %p177 = scmp.eq.s32.totalorder %s18, 2
      %p178 = por %p176, %p177
      %p179 = scmp.ne.s32.totalorder %s168, %s169
      %p180 = scmp.eq.s32.totalorder %s18, 0
      %p181 = por %p179, %p180
      %p182 = scmp.ne.s32.totalorder %s168, %s169
      %p183 = scmp.eq.s32.totalorder %s19, 2
      %p184 = por %p182, %p183
      %p186 = scmp.ne.s32.totalorder %s169, %s185
      %p187 = scmp.eq.s32.totalorder %s19, 0
      %p188 = por %p186, %p187
      %p189 = scmp.le.s32.totalorder 1, %s13
      %p190 = scmp.lt.s32.totalorder %s13, 4
      %p191 = pnand %p189, %p190
      %p192 = pneg %p191
      // Predicated region
      $region9: #{tpu_custom_call.1} parent=5 // pred_check
        _
      $region10: #{tpu_custom_call.1} parent=5 // pred_check_branch
        %194 = sbr.rel (%p191) target = $region12
      $region11: #{tpu_custom_call.1} parent=5 // pred_region
        %s195 = ssub.s32 %s13, 1
        // Predicated region
        $region13: #{tpu_custom_call.1} parent=11 // pred_check
          %p196 = pneg %p51
        $region14: #{tpu_custom_call.1} parent=11 // pred_check_branch
          %198 = sbr.rel (%p196) target = $region16
        $region15: #{tpu_custom_call.1} parent=11 // pred_region
          %s199 = smul.u32 16, %s23
          %p200 = scmp.lt.s32.totalorder %s199, 15
          %s201 = scalar_select %p200, %s199, 15
          %s202 = smul.addr %s201, 4
          %s203 = scalar_lea.vmem %s0, %s202
          %s204 = smul.u32 16, %s23
        $region16: #{tpu_custom_call.1} parent=11 // pred_fallthru
          _
        // Predicated region
        $region17: #{tpu_custom_call.1} parent=11 // pred_check
          %p205 = pneg %p129
        $region18: #{tpu_custom_call.1} parent=11 // pred_check_branch
          %207 = sbr.rel (%p205) target = $region20
        $region19: #{tpu_custom_call.1} parent=11 // pred_region
          %s208 = smul.u32 16, %s23
          %p209 = scmp.lt.s32.totalorder %s208, 15
          %s210 = scalar_select %p209, %s208, 15
          %s211 = smul.addr %s210, 8
          %s212 = scalar_lea.vmem %s4, %s211
          %s213 = smul.u32 16, %s23
        $region20: #{tpu_custom_call.1} parent=11 // pred_fallthru
          _
        // Predicated region
        $region21: #{tpu_custom_call.1} parent=11 // pred_check
          %p214 = pneg %p155
        $region22: #{tpu_custom_call.1} parent=11 // pred_check_branch
          %216 = sbr.rel (%p214) target = $region24
        $region23: #{tpu_custom_call.1} parent=11 // pred_region
          %s217 = smul.u32 16, %s23
          %p218 = scmp.lt.s32.totalorder %s217, 15
          %s219 = scalar_select %p218, %s217, 15
          %s220 = smul.addr %s219, 8
          %s221 = scalar_lea.vmem %s5, %s220
          %s222 = smul.u32 16, %s23
        $region24: #{tpu_custom_call.1} parent=11 // pred_fallthru
          _
      $region12: #{tpu_custom_call.1} parent=5 // pred_fallthru
        _
      %p223 = scmp.lt.s32.totalorder %s13, 3
      // Predicated region
      $region25: #{tpu_custom_call.1} parent=5 // pred_check
        %p224 = pneg %p223
      $region26: #{tpu_custom_call.1} parent=5 // pred_check_branch
        %226 = sbr.rel (%p224) target = $region28
      $region27: #{tpu_custom_call.1} parent=5 // pred_region
        // Predicated region
        $region29: #{tpu_custom_call.1} parent=27 // pred_check
          %p227 = pneg %p71
        $region30: #{tpu_custom_call.1} parent=27 // pred_check_branch
          %229 = sbr.rel (%p227) target = $region32
        $region31: #{tpu_custom_call.1} parent=27 // pred_region
          %p230 = scmp.lt.s32.totalorder %s20, 2
          %s231 = scalar_select %p230, %s20, 2
          %s232 = smul.addr %s231, 16
          %s233 = smul.addr %s232, 4
          %s234 = scalar_lea.vmem %s2, %s233
        $region32: #{tpu_custom_call.1} parent=27 // pred_fallthru
          _
        // Predicated region
        $region33: #{tpu_custom_call.1} parent=27 // pred_check
          %p235 = pneg %p97
        $region34: #{tpu_custom_call.1} parent=27 // pred_check_branch
          %237 = sbr.rel (%p235) target = $region36
        $region35: #{tpu_custom_call.1} parent=27 // pred_region
          %p238 = scmp.lt.s32.totalorder %s20, 2
          %s239 = scalar_select %p238, %s20, 2
          %s240 = scalar_lea.vmem %s3, %s239
        $region36: #{tpu_custom_call.1} parent=27 // pred_fallthru
          _
      $region28: #{tpu_custom_call.1} parent=5 // pred_fallthru
        _
      %p241 = scmp.le.s32.totalorder 1, %s13
      %p242 = scmp.lt.s32.totalorder %s13, 4
      %p243 = pnand %p241, %p242
      %p244 = pneg %p243
      // Predicated region
      $region37: #{tpu_custom_call.1} parent=5 // pred_check
        _
      $region38: #{tpu_custom_call.1} parent=5 // pred_check_branch
        %246 = sbr.rel (%p243) target = $region40
      $region39: #{tpu_custom_call.1} parent=5 // pred_region
        %s247 = ssub.s32 %s13, 1
        %s248 = smul.u32 16, %s23
        %p249 = scmp.lt.s32.totalorder %s248, 15
        %s250 = scalar_select %p249, %s248, 15
        %s251 = smul.addr %s250, 4
        %s252 = scalar_lea.vmem %s0, %s251
        %p253 = pneg %p51
        %p254 = pneg %p48
        %p255 = scmp.lt.s32.totalorder %s22, 2
        %s256 = scalar_select %p255, %s22, 2
        %s257 = smul.addr %s256, 16
        %s258 = smul.addr %s257, 4
        %s259 = scalar_lea.vmem %s2, %s258
        %p260 = pneg %p77
        %p261 = pneg %p74
        %p262 = scmp.lt.s32.totalorder %s22, 2
        %s263 = scalar_select %p262, %s22, 2
        %s264 = scalar_lea.vmem %s3, %s263
        %p265 = pneg %p103
        %p266 = pneg %p100
        %s267 = smul.u32 16, %s23
        %p268 = scmp.lt.s32.totalorder %s267, 15
        %s269 = scalar_select %p268, %s267, 15
        %s270 = smul.addr %s269, 8
        %s271 = scalar_lea.vmem %s4, %s270
        %p272 = pneg %p129
        %p273 = pneg %p126
        %s274 = smul.u32 16, %s23
        %p275 = scmp.lt.s32.totalorder %s274, 15
        %s276 = scalar_select %p275, %s274, 15
        %s277 = smul.addr %s276, 8
        %s278 = scalar_lea.vmem %s5, %s277
        %p279 = pneg %p155
        %p280 = pneg %p152
        %p281 = pneg %p181
        %p282 = pneg %p178
        %s283 = smul.u32 16, %s23
        %p284 = scmp.lt.s32.totalorder %s283, 15
        %s285 = scalar_select %p284, %s283, 15
        %s286 = smul.addr %s285, 4
        %s287 = scalar_lea.vmem %s0, %s286
        %s288 = smul.u32 16, %s23
        %p289 = scmp.lt.s32.totalorder %s22, 2
        %s290 = scalar_select %p289, %s22, 2
        %s291 = smul.addr %s290, 16
        %s292 = smul.addr %s291, 4
        %s293 = scalar_lea.vmem %s2, %s292
        %p294 = scmp.lt.s32.totalorder %s22, 2
        %s295 = scalar_select %p294, %s22, 2
        %s296 = scalar_lea.vmem %s3, %s295
        %s297 = smul.u32 16, %s23
        %p298 = scmp.lt.s32.totalorder %s297, 15
        %s299 = scalar_select %p298, %s297, 15
        %s300 = smul.addr %s299, 8
        %s301 = scalar_lea.vmem %s4, %s300
        %s302 = smul.u32 16, %s23
        %s303 = smul.u32 16, %s23
        %p304 = scmp.lt.s32.totalorder %s303, 15
        %s305 = scalar_select %p304, %s303, 15
        %s306 = smul.addr %s305, 8
        %s307 = scalar_lea.vmem %s5, %s306
        %s308 = smul.u32 16, %s23
        %s309 = smul.u32 16, %s23
        %s311 = smul.u32 %s23, 128
        %p312 = scmp.eq.s32.totalorder %s22, 0
        %p313 = scmp.eq.s32.totalorder %s23, 0
        %p314 = pnand %p312, %p313
        %p315 = pneg %p314
        // Predicated region
        $region41: #{tpu_custom_call.1} parent=39 // pred_check
          _
        $region42: #{tpu_custom_call.1} parent=39 // pred_check_branch
          %317 = sbr.rel (%p314) target = $region44
        $region43: #{tpu_custom_call.1} parent=39 // pred_region
          $region45: #{tpu_custom_call.1} parent=43
            #allocation6 [shape = 's32[1]{0}', space=sflag, size = 0x4, scoped, tag = 'scoped memory for tpu_custom_call.1']
            // Predicated region
            $region46: #{tpu_custom_call.1} parent=45 // pred_check
              _
            $region47: #{tpu_custom_call.1} parent=45 // pred_check_branch
              %319 = sbr.rel target = $region49
            $region48: #{tpu_custom_call.1} parent=45 // pred_region
              %320 = sst [smem:[#allocation9]] [#allocation8]
              %321 = sst [smem:[#allocation10]] [#allocation7]
            $region49: #{tpu_custom_call.1} parent=45 // pred_fallthru
              _
            %323 = shalt.err (0)
            %s325 = sshll.u32 [#allocation3], 4
            %s326 = int_to_ptr.vmem [resolvable:$true] %s325
            %328 = dma.hbm_to_vmem [thread:$0]  %s1, 1024, %s326, [#allocation6]
            %s329 = smul.u32 4, 16
            %s330 = smul.u32 %s329, 1
            %s331 = sshll.u32 %s330, 4
            %332 = dma.done [#allocation6], %s331
        $region44: #{tpu_custom_call.1} parent=39 // pred_fallthru
          _
        %p333 = scmp.lt.s32.totalorder %s22, 0
        %s334 = ssub.s32 0, %s22
        %s335 = scalar_select %p333, %s334, %s22
        %s336 = sand.u32 %s335, 1
        %s337 = ssub.s32 0, %s336
        %s338 = scalar_select %p333, %s337, %s336
        %p339 = scmp.ne.s32.totalorder %s338, 0
        %p340 = scmp.lt.s32.totalorder %s338, 0
        %p341 = pnand %p340, %p339
        %p342 = pneg %p341
        %s343 = sadd.s32 %s338, 2
        %s344 = scalar_select %p342, %s343, %s338
        %p345 = scmp.eq.s32.totalorder %s344, 0
        // Predicated region
        $region50: #{tpu_custom_call.1} parent=39 // pred_check
          %p346 = pneg %p345
        $region51: #{tpu_custom_call.1} parent=39 // pred_check_branch
          %348 = sbr.rel (%p346) target = $region53
        $region52: #{tpu_custom_call.1} parent=39 // pred_region
          %v349 = vld [vmem:[%s287] sm:$0xf]
          %v350 = vld [vmem:[%s287 + $0x4] sm:$0xf]
          %v351 = vld [vmem:[%s287 + $0x8] sm:$0xf]
          %v352 = vld [vmem:[%s287 + $0xc] sm:$0xf]
          %v353 = vld [vmem:[%s287 + $0x10] sm:$0xf]
          %v354 = vld [vmem:[%s287 + $0x14] sm:$0xf]
          %v355 = vld [vmem:[%s287 + $0x18] sm:$0xf]
          %v356 = vld [vmem:[%s287 + $0x1c] sm:$0xf]
          %v357 = vld [vmem:[%s287 + $0x20] sm:$0xf]
          %v358 = vld [vmem:[%s287 + $0x24] sm:$0xf]
          %v359 = vld [vmem:[%s287 + $0x28] sm:$0xf]
          %v360 = vld [vmem:[%s287 + $0x2c] sm:$0xf]
          %v361 = vld [vmem:[%s287 + $0x30] sm:$0xf]
          %v362 = vld [vmem:[%s287 + $0x34] sm:$0xf]
          %v363 = vld [vmem:[%s287 + $0x38] sm:$0xf]
          %v364 = vld [vmem:[%s287 + $0x3c] sm:$0xf]
          %v365 = vld [vmem:[#allocation3] sm:$0xf]
          %v366 = vld [vmem:[#allocation3 + $0x4] sm:$0xf]
          %v367 = vld [vmem:[#allocation3 + $0x8] sm:$0xf]
          %v368 = vld [vmem:[#allocation3 + $0xc] sm:$0xf]
          %v369 = vld [vmem:[#allocation3 + $0x10] sm:$0xf]
          %v370 = vld [vmem:[#allocation3 + $0x14] sm:$0xf]
          %v371 = vld [vmem:[#allocation3 + $0x18] sm:$0xf]
          %v372 = vld [vmem:[#allocation3 + $0x1c] sm:$0xf]
          %v373 = vld [vmem:[#allocation3 + $0x20] sm:$0xf]
          %v374 = vld [vmem:[#allocation3 + $0x24] sm:$0xf]
          %v375 = vld [vmem:[#allocation3 + $0x28] sm:$0xf]
          %v376 = vld [vmem:[#allocation3 + $0x2c] sm:$0xf]
          %v377 = vld [vmem:[#allocation3 + $0x30] sm:$0xf]
          %v378 = vld [vmem:[#allocation3 + $0x34] sm:$0xf]
          %v379 = vld [vmem:[#allocation3 + $0x38] sm:$0xf]
          %v380 = vld [vmem:[#allocation3 + $0x3c] sm:$0xf]
          %v397 = vunpack.c.l.b16 %v349
          %v398 = vunpack.c.l.b16 %v350
          %v399 = vunpack.c.l.b16 %v351
          %v400 = vunpack.c.l.b16 %v352
          %v401 = vunpack.c.l.b16 %v353
          %v402 = vunpack.c.l.b16 %v354
          %v403 = vunpack.c.l.b16 %v355
          %v404 = vunpack.c.l.b16 %v356
          %v405 = vunpack.c.l.b16 %v357
          %v406 = vunpack.c.l.b16 %v358
          %v407 = vunpack.c.l.b16 %v359
          %v408 = vunpack.c.l.b16 %v360
          %v409 = vunpack.c.l.b16 %v361
          %v410 = vunpack.c.l.b16 %v362
          %v411 = vunpack.c.l.b16 %v363
          %v412 = vunpack.c.l.b16 %v364
          %v413 = vpack.c.b16 %v398, %v397
          %v414 = vpack.c.b16 %v400, %v399
          %v415 = vpack.c.b16 %v402, %v401
          %v416 = vpack.c.b16 %v404, %v403
          %v417 = vpack.c.b16 %v406, %v405
          %v418 = vpack.c.b16 %v408, %v407
          %v419 = vpack.c.b16 %v410, %v409
          %v420 = vpack.c.b16 %v412, %v411
          %v445 = vunpack.c.l.b16 %v365
          %v446 = vunpack.c.l.b16 %v366
          %v447 = vunpack.c.l.b16 %v367
          %v448 = vunpack.c.l.b16 %v368
          %v449 = vunpack.c.l.b16 %v369
          %v450 = vunpack.c.l.b16 %v370
          %v451 = vunpack.c.l.b16 %v371
          %v452 = vunpack.c.l.b16 %v372
          %v453 = vunpack.c.l.b16 %v373
          %v454 = vunpack.c.l.b16 %v374
          %v455 = vunpack.c.l.b16 %v375
          %v456 = vunpack.c.l.b16 %v376
          %v457 = vunpack.c.l.b16 %v377
          %v458 = vunpack.c.l.b16 %v378
          %v459 = vunpack.c.l.b16 %v379
          %v460 = vunpack.c.l.b16 %v380
          %v461 = vpack.c.b16 %v446, %v445
          %v462 = vpack.c.b16 %v448, %v447
          %v463 = vpack.c.b16 %v450, %v449
          %v464 = vpack.c.b16 %v452, %v451
          %v465 = vpack.c.b16 %v454, %v453
          %v466 = vpack.c.b16 %v456, %v455
          %v467 = vpack.c.b16 %v458, %v457
          %v468 = vpack.c.b16 %v460, %v459
          %477 = vmatprep.subr.bf16.mxu0 0
          %478 = vmatpush1.bf16.msra.mxu0 %v468
          %479 = vmatprep.subr.bf16.mxu0 0
          %480 = vmatpush1.bf16.msra.mxu0 %v467
          %481 = vmatprep.subr.bf16.mxu0 0
          %482 = vmatpush1.bf16.msra.mxu0 %v466
          %483 = vmatprep.subr.bf16.mxu0 0
          %484 = vmatpush1.bf16.msra.mxu0 %v465
          %485 = vmatprep.subr.bf16.mxu0 0
          %486 = vmatpush1.bf16.msra.mxu0 %v464
          %487 = vmatprep.subr.bf16.mxu0 0
          %488 = vmatpush1.bf16.msra.mxu0 %v463
          %489 = vmatprep.subr.bf16.mxu0 0
          %490 = vmatpush1.bf16.msra.mxu0 %v462
          %491 = vmatprep.subr.bf16.mxu0 0
          %492 = vmatpush1.bf16.msra.mxu0 %v461
          %493 = vmatprep.subr.bf16.mxu0 0
          %494 = vmatpush2.bf16.msra.mxu0 0
          %495 = vmatprep.subr.bf16.mxu0 0
          %496 = vmatpush2.bf16.msra.mxu0 0
          %497 = vmatprep.subr.bf16.mxu0 0
          %498 = vmatpush2.bf16.msra.mxu0 0
          %499 = vmatprep.subr.bf16.mxu0 0
          %500 = vmatpush2.bf16.msra.mxu0 0
          %501 = vmatprep.subr.bf16.mxu0 0
          %502 = vmatpush2.bf16.msra.mxu0 0
          %503 = vmatprep.subr.bf16.mxu0 0
          %504 = vmatpush2.bf16.msra.mxu0 0
          %505 = vmatprep.subr.bf16.mxu0 0
          %506 = vmatpush2.bf16.msra.mxu0 0
          %507 = vmatprep.subr.bf16.mxu0 0
          %508 = vmatpush2.bf16.msra.mxu0 0
          %509 = vmatprep.mubr.bf16.mxu0 0
          %510 = vmatmul.mubr.bf16.gmra.mxu0 %v413
          %v511 = vpop.f32.mrf.mxu0
          %v512 = vadd.f32 0.0, %v511
          %v513 = vpop.f32.mrf.mxu0
          %v514 = vpop.f32.mrf.mxu0
          %v515 = vadd.f32 0.0, %v514
          %v516 = vpop.f32.mrf.mxu0
          %517 = vmatprep.mubr.bf16.mxu0 0
          %518 = vmatmul.mubr.bf16.gmra.mxu0 %v414
          %v519 = vpop.f32.mrf.mxu0
          %v520 = vadd.f32 0.0, %v519
          %v521 = vpop.f32.mrf.mxu0
          %v522 = vpop.f32.mrf.mxu0
          %v523 = vadd.f32 0.0, %v522
          %v524 = vpop.f32.mrf.mxu0
          %525 = vmatprep.mubr.bf16.mxu0 0
          %526 = vmatmul.mubr.bf16.gmra.mxu0 %v415
          %v527 = vpop.f32.mrf.mxu0
          %v528 = vadd.f32 0.0, %v527
          %v529 = vpop.f32.mrf.mxu0
          %v530 = vpop.f32.mrf.mxu0
          %v531 = vadd.f32 0.0, %v530
          %v532 = vpop.f32.mrf.mxu0
          %533 = vmatprep.mubr.bf16.mxu0 0
          %534 = vmatmul.mubr.bf16.gmra.mxu0 %v416
          %v535 = vpop.f32.mrf.mxu0
          %v536 = vadd.f32 0.0, %v535
          %v537 = vpop.f32.mrf.mxu0
          %v538 = vpop.f32.mrf.mxu0
          %v539 = vadd.f32 0.0, %v538
          %v540 = vpop.f32.mrf.mxu0
          %541 = vmatprep.mubr.bf16.mxu0 0
          %542 = vmatmul.mubr.bf16.gmra.mxu0 %v417
          %v543 = vpop.f32.mrf.mxu0
          %v544 = vadd.f32 0.0, %v543
          %v545 = vpop.f32.mrf.mxu0
          %v546 = vpop.f32.mrf.mxu0
          %v547 = vadd.f32 0.0, %v546
          %v548 = vpop.f32.mrf.mxu0
          %549 = vmatprep.mubr.bf16.mxu0 0
          %550 = vmatmul.mubr.bf16.gmra.mxu0 %v418
          %v551 = vpop.f32.mrf.mxu0
          %v552 = vadd.f32 0.0, %v551
          %v553 = vpop.f32.mrf.mxu0
          %v554 = vpop.f32.mrf.mxu0
          %v555 = vadd.f32 0.0, %v554
          %v556 = vpop.f32.mrf.mxu0
          %557 = vmatprep.mubr.bf16.mxu0 0
          %558 = vmatmul.mubr.bf16.gmra.mxu0 %v419
          %v559 = vpop.f32.mrf.mxu0
          %v560 = vadd.f32 0.0, %v559
          %v561 = vpop.f32.mrf.mxu0
          %v562 = vpop.f32.mrf.mxu0
          %v563 = vadd.f32 0.0, %v562
          %v564 = vpop.f32.mrf.mxu0
          %565 = vmatprep.mubr.bf16.mxu0 0
          %566 = vmatmul.mubr.bf16.gmra.mxu0 %v420
          %v567 = vpop.f32.mrf.mxu0
          %v568 = vadd.f32 0.0, %v567
          %v569 = vpop.f32.mrf.mxu0
          %v570 = vpop.f32.mrf.mxu0
          %v571 = vadd.f32 0.0, %v570
          %v572 = vpop.f32.mrf.mxu0
          %573 = vdwg.mxu0
          %v574 = vld [vmem:[%s301] sm:$0xff]
          %v575 = vld [vmem:[%s301 + $0x8] sm:$0xff]
          %v576 = vld [vmem:[%s301 + $0x10] sm:$0xff]
          %v577 = vld [vmem:[%s301 + $0x18] sm:$0xff]
          %v578 = vld [vmem:[%s301 + $0x20] sm:$0xff]
          %v579 = vld [vmem:[%s301 + $0x28] sm:$0xff]
          %v580 = vld [vmem:[%s301 + $0x30] sm:$0xff]
          %v581 = vld [vmem:[%s301 + $0x38] sm:$0xff]
          %v582 = vld [vmem:[%s301 + $0x40] sm:$0xff]
          %v583 = vld [vmem:[%s301 + $0x48] sm:$0xff]
          %v584 = vld [vmem:[%s301 + $0x50] sm:$0xff]
          %v585 = vld [vmem:[%s301 + $0x58] sm:$0xff]
          %v586 = vld [vmem:[%s301 + $0x60] sm:$0xff]
          %v587 = vld [vmem:[%s301 + $0x68] sm:$0xff]
          %v588 = vld [vmem:[%s301 + $0x70] sm:$0xff]
          %v589 = vld [vmem:[%s301 + $0x78] sm:$0xff]
          %591 = vset.pattern.permute.xlu0 0
          %592 = vperm.xlu0 %591, %v574
          %v593 = vpop.permute.xlu0 %592
          %596 = vset.pattern.permute.xlu0 0
          %597 = vperm.xlu0 %596, %v575
          %v598 = vpop.permute.xlu0 %597
          %601 = vset.pattern.permute.xlu0 0
          %602 = vperm.xlu0 %601, %v576
          %v603 = vpop.permute.xlu0 %602
          %606 = vset.pattern.permute.xlu0 0
          %607 = vperm.xlu0 %606, %v577
          %v608 = vpop.permute.xlu0 %607
          %611 = vset.pattern.permute.xlu0 0
          %612 = vperm.xlu0 %611, %v578
          %v613 = vpop.permute.xlu0 %612
          %616 = vset.pattern.permute.xlu0 0
          %617 = vperm.xlu0 %616, %v579
          %v618 = vpop.permute.xlu0 %617
          %621 = vset.pattern.permute.xlu0 0
          %622 = vperm.xlu0 %621, %v580
          %v623 = vpop.permute.xlu0 %622
          %626 = vset.pattern.permute.xlu0 0
          %627 = vperm.xlu0 %626, %v581
          %v628 = vpop.permute.xlu0 %627
          %631 = vset.pattern.permute.xlu0 0
          %632 = vperm.xlu0 %631, %v582
          %v633 = vpop.permute.xlu0 %632
          %636 = vset.pattern.permute.xlu0 0
          %637 = vperm.xlu0 %636, %v583
          %v638 = vpop.permute.xlu0 %637
          %641 = vset.pattern.permute.xlu0 0
          %642 = vperm.xlu0 %641, %v584
          %v643 = vpop.permute.xlu0 %642
          %646 = vset.pattern.permute.xlu0 0
          %647 = vperm.xlu0 %646, %v585
          %v648 = vpop.permute.xlu0 %647
          %651 = vset.pattern.permute.xlu0 0
          %652 = vperm.xlu0 %651, %v586
          %v653 = vpop.permute.xlu0 %652
          %656 = vset.pattern.permute.xlu0 0
          %657 = vperm.xlu0 %656, %v587
          %v658 = vpop.permute.xlu0 %657
          %661 = vset.pattern.permute.xlu0 0
          %662 = vperm.xlu0 %661, %v588
          %v663 = vpop.permute.xlu0 %662
          %666 = vset.pattern.permute.xlu0 0
          %667 = vperm.xlu0 %666, %v589
          %v668 = vpop.permute.xlu0 %667
          %v670 = vmul.f32 %v512, %v593
          %v671 = vmul.f32 %v515, %v598
          %v672 = vmul.f32 %v520, %v603
          %v673 = vmul.f32 %v523, %v608
          %v674 = vmul.f32 %v528, %v613
          %v675 = vmul.f32 %v531, %v618
          %v676 = vmul.f32 %v536, %v623
          %v677 = vmul.f32 %v539, %v628
          %v678 = vmul.f32 %v544, %v633
          %v679 = vmul.f32 %v547, %v638
          %v680 = vmul.f32 %v552, %v643
          %v681 = vmul.f32 %v555, %v648
          %v682 = vmul.f32 %v560, %v653
          %v683 = vmul.f32 %v563, %v658
          %v684 = vmul.f32 %v568, %v663
          %v685 = vmul.f32 %v571, %v668
          %v686 = vpack.c.bf16 %v671, %v670
          %v687 = vpack.c.bf16 %v673, %v672
          %v688 = vpack.c.bf16 %v675, %v674
          %v689 = vpack.c.bf16 %v677, %v676
          %v690 = vpack.c.bf16 %v679, %v678
          %v691 = vpack.c.bf16 %v681, %v680
          %v692 = vpack.c.bf16 %v683, %v682
          %v693 = vpack.c.bf16 %v685, %v684
          %v694 = vld [vmem:[%s293] sm:$0xf]
          %v695 = vld [vmem:[%s293 + $0x4] sm:$0xf]
          %v696 = vld [vmem:[%s293 + $0x8] sm:$0xf]
          %v697 = vld [vmem:[%s293 + $0xc] sm:$0xf]
          %v698 = vld [vmem:[%s293 + $0x10] sm:$0xf]
          %v699 = vld [vmem:[%s293 + $0x14] sm:$0xf]
          %v700 = vld [vmem:[%s293 + $0x18] sm:$0xf]
          %v701 = vld [vmem:[%s293 + $0x1c] sm:$0xf]
          %v702 = vld [vmem:[%s293 + $0x20] sm:$0xf]
          %v703 = vld [vmem:[%s293 + $0x24] sm:$0xf]
          %v704 = vld [vmem:[%s293 + $0x28] sm:$0xf]
          %v705 = vld [vmem:[%s293 + $0x2c] sm:$0xf]
          %v706 = vld [vmem:[%s293 + $0x30] sm:$0xf]
          %v707 = vld [vmem:[%s293 + $0x34] sm:$0xf]
          %v708 = vld [vmem:[%s293 + $0x38] sm:$0xf]
          %v709 = vld [vmem:[%s293 + $0x3c] sm:$0xf]
          %v710 = vld [vmem:[%s296] sm:$0x1]
          %v712 = vlaneseq
          %v713 = vshrl.u32 %v712, 7
          %v714 = vsub.s32 0, %v713
          %v715 = vrot.slane %v710, %v714
          %v733 = vunpack.c.l.b16 %v694
          %v734 = vunpack.c.l.b16 %v695
          %v735 = vunpack.c.l.b16 %v696
          %v736 = vunpack.c.l.b16 %v697
          %v737 = vunpack.c.l.b16 %v698
          %v738 = vunpack.c.l.b16 %v699
          %v739 = vunpack.c.l.b16 %v700
          %v740 = vunpack.c.l.b16 %v701
          %v741 = vunpack.c.l.b16 %v702
          %v742 = vunpack.c.l.b16 %v703
          %v743 = vunpack.c.l.b16 %v704
          %v744 = vunpack.c.l.b16 %v705
          %v745 = vunpack.c.l.b16 %v706
          %v746 = vunpack.c.l.b16 %v707
          %v747 = vunpack.c.l.b16 %v708
          %v748 = vunpack.c.l.b16 %v709
          %v749 = vpack.c.b16 %v734, %v733
          %v750 = vpack.c.b16 %v736, %v735
          %v751 = vpack.c.b16 %v738, %v737
          %v752 = vpack.c.b16 %v740, %v739
          %v753 = vpack.c.b16 %v742, %v741
          %v754 = vpack.c.b16 %v744, %v743
          %v755 = vpack.c.b16 %v746, %v745
          %v756 = vpack.c.b16 %v748, %v747
          %765 = vmatprep.subr.bf16.mxu0 0
          %766 = vmatpush1.bf16.msra.mxu0 %v756
          %767 = vmatprep.subr.bf16.mxu0 0
          %768 = vmatpush1.bf16.msra.mxu0 %v755
          %769 = vmatprep.subr.bf16.mxu0 0
          %770 = vmatpush1.bf16.msra.mxu0 %v754
          %771 = vmatprep.subr.bf16.mxu0 0
          %772 = vmatpush1.bf16.msra.mxu0 %v753
          %773 = vmatprep.subr.bf16.mxu0 0
          %774 = vmatpush1.bf16.msra.mxu0 %v752
          %775 = vmatprep.subr.bf16.mxu0 0
          %776 = vmatpush1.bf16.msra.mxu0 %v751
          %777 = vmatprep.subr.bf16.mxu0 0
          %778 = vmatpush1.bf16.msra.mxu0 %v750
          %779 = vmatprep.subr.bf16.mxu0 0
          %780 = vmatpush1.bf16.msra.mxu0 %v749
          %781 = vmatprep.subr.bf16.mxu0 0
          %782 = vmatpush2.bf16.msra.mxu0 0
          %783 = vmatprep.subr.bf16.mxu0 0
          %784 = vmatpush2.bf16.msra.mxu0 0
          %785 = vmatprep.subr.bf16.mxu0 0
          %786 = vmatpush2.bf16.msra.mxu0 0
          %787 = vmatprep.subr.bf16.mxu0 0
          %788 = vmatpush2.bf16.msra.mxu0 0
          %789 = vmatprep.subr.bf16.mxu0 0
          %790 = vmatpush2.bf16.msra.mxu0 0
          %791 = vmatprep.subr.bf16.mxu0 0
          %792 = vmatpush2.bf16.msra.mxu0 0
          %793 = vmatprep.subr.bf16.mxu0 0
          %794 = vmatpush2.bf16.msra.mxu0 0
          %795 = vmatprep.subr.bf16.mxu0 0
          %796 = vmatpush2.bf16.msra.mxu0 0
          %797 = vmatprep.mubr.bf16.mxu0 0
          %798 = vmatmul.mubr.bf16.gmra.mxu0 %v686
          %v799 = vpop.f32.mrf.mxu0
          %v800 = vadd.f32 %v715, %v799
          %v801 = vpop.f32.mrf.mxu0
          %v802 = vpop.f32.mrf.mxu0
          %v803 = vadd.f32 %v715, %v802
          %v804 = vpop.f32.mrf.mxu0
          %805 = vmatprep.mubr.bf16.mxu0 0
          %806 = vmatmul.mubr.bf16.gmra.mxu0 %v687
          %v807 = vpop.f32.mrf.mxu0
          %v808 = vadd.f32 %v715, %v807
          %v809 = vpop.f32.mrf.mxu0
          %v810 = vpop.f32.mrf.mxu0
          %v811 = vadd.f32 %v715, %v810
          %v812 = vpop.f32.mrf.mxu0
          %813 = vmatprep.mubr.bf16.mxu0 0
          %814 = vmatmul.mubr.bf16.gmra.mxu0 %v688
          %v815 = vpop.f32.mrf.mxu0
          %v816 = vadd.f32 %v715, %v815
          %v817 = vpop.f32.mrf.mxu0
          %v818 = vpop.f32.mrf.mxu0
          %v819 = vadd.f32 %v715, %v818
          %v820 = vpop.f32.mrf.mxu0
          %821 = vmatprep.mubr.bf16.mxu0 0
          %822 = vmatmul.mubr.bf16.gmra.mxu0 %v689
          %v823 = vpop.f32.mrf.mxu0
          %v824 = vadd.f32 %v715, %v823
          %v825 = vpop.f32.mrf.mxu0
          %v826 = vpop.f32.mrf.mxu0
          %v827 = vadd.f32 %v715, %v826
          %v828 = vpop.f32.mrf.mxu0
          %829 = vmatprep.mubr.bf16.mxu0 0
          %830 = vmatmul.mubr.bf16.gmra.mxu0 %v690
          %v831 = vpop.f32.mrf.mxu0
          %v832 = vadd.f32 %v715, %v831
          %v833 = vpop.f32.mrf.mxu0
          %v834 = vpop.f32.mrf.mxu0
          %v835 = vadd.f32 %v715, %v834
          %v836 = vpop.f32.mrf.mxu0
          %837 = vmatprep.mubr.bf16.mxu0 0
          %838 = vmatmul.mubr.bf16.gmra.mxu0 %v691
          %v839 = vpop.f32.mrf.mxu0
          %v840 = vadd.f32 %v715, %v839
          %v841 = vpop.f32.mrf.mxu0
          %v842 = vpop.f32.mrf.mxu0
          %v843 = vadd.f32 %v715, %v842
          %v844 = vpop.f32.mrf.mxu0
          %845 = vmatprep.mubr.bf16.mxu0 0
          %846 = vmatmul.mubr.bf16.gmra.mxu0 %v692
          %v847 = vpop.f32.mrf.mxu0
          %v848 = vadd.f32 %v715, %v847
          %v849 = vpop.f32.mrf.mxu0
          %v850 = vpop.f32.mrf.mxu0
          %v851 = vadd.f32 %v715, %v850
          %v852 = vpop.f32.mrf.mxu0
          %853 = vmatprep.mubr.bf16.mxu0 0
          %854 = vmatmul.mubr.bf16.gmra.mxu0 %v693
          %v855 = vpop.f32.mrf.mxu0
          %v856 = vadd.f32 %v715, %v855
          %v857 = vpop.f32.mrf.mxu0
          %v858 = vpop.f32.mrf.mxu0
          %v859 = vadd.f32 %v715, %v858
          %v860 = vpop.f32.mrf.mxu0
          %861 = vdwg.mxu0
          %p862 = scmp.lt.s32.totalorder %s22, 2
          // Predicated region
          $region54: #{tpu_custom_call.1} parent=52 // pred_check
            %p863 = pneg %p862
          $region55: #{tpu_custom_call.1} parent=52 // pred_check_branch
            %865 = sbr.rel (%p863) target = $region57
          $region56: #{tpu_custom_call.1} parent=52 // pred_region
            %v866 = vmax.f32 %v800, 0.0
            %v867 = vmax.f32 %v803, 0.0
            %v868 = vmax.f32 %v808, 0.0
            %v869 = vmax.f32 %v811, 0.0
            %v870 = vmax.f32 %v816, 0.0
            %v871 = vmax.f32 %v819, 0.0
            %v872 = vmax.f32 %v824, 0.0
            %v873 = vmax.f32 %v827, 0.0
            %v874 = vmax.f32 %v832, 0.0
            %v875 = vmax.f32 %v835, 0.0
            %v876 = vmax.f32 %v840, 0.0
            %v877 = vmax.f32 %v843, 0.0
            %v878 = vmax.f32 %v848, 0.0
            %v879 = vmax.f32 %v851, 0.0
            %v880 = vmax.f32 %v856, 0.0
            %v881 = vmax.f32 %v859, 0.0
            %v882 = vld [vmem:[%s307] sm:$0xff]
            %v883 = vld [vmem:[%s307 + $0x8] sm:$0xff]
            %v884 = vld [vmem:[%s307 + $0x10] sm:$0xff]
            %v885 = vld [vmem:[%s307 + $0x18] sm:$0xff]
            %v886 = vld [vmem:[%s307 + $0x20] sm:$0xff]
            %v887 = vld [vmem:[%s307 + $0x28] sm:$0xff]
            %v888 = vld [vmem:[%s307 + $0x30] sm:$0xff]
            %v889 = vld [vmem:[%s307 + $0x38] sm:$0xff]
            %v890 = vld [vmem:[%s307 + $0x40] sm:$0xff]
            %v891 = vld [vmem:[%s307 + $0x48] sm:$0xff]
            %v892 = vld [vmem:[%s307 + $0x50] sm:$0xff]
            %v893 = vld [vmem:[%s307 + $0x58] sm:$0xff]
            %v894 = vld [vmem:[%s307 + $0x60] sm:$0xff]
            %v895 = vld [vmem:[%s307 + $0x68] sm:$0xff]
            %v896 = vld [vmem:[%s307 + $0x70] sm:$0xff]
            %v897 = vld [vmem:[%s307 + $0x78] sm:$0xff]
            %899 = vset.pattern.permute.xlu0 0
            %900 = vperm.xlu0 %899, %v882
            %v901 = vpop.permute.xlu0 %900
            %904 = vset.pattern.permute.xlu0 0
            %905 = vperm.xlu0 %904, %v883
            %v906 = vpop.permute.xlu0 %905
            %909 = vset.pattern.permute.xlu0 0
            %910 = vperm.xlu0 %909, %v884
            %v911 = vpop.permute.xlu0 %910
            %914 = vset.pattern.permute.xlu0 0
            %915 = vperm.xlu0 %914, %v885
            %v916 = vpop.permute.xlu0 %915
            %919 = vset.pattern.permute.xlu0 0
            %920 = vperm.xlu0 %919, %v886
            %v921 = vpop.permute.xlu0 %920
            %924 = vset.pattern.permute.xlu0 0
            %925 = vperm.xlu0 %924, %v887
            %v926 = vpop.permute.xlu0 %925
            %929 = vset.pattern.permute.xlu0 0
            %930 = vperm.xlu0 %929, %v888
            %v931 = vpop.permute.xlu0 %930
            %934 = vset.pattern.permute.xlu0 0
            %935 = vperm.xlu0 %934, %v889
            %v936 = vpop.permute.xlu0 %935
            %939 = vset.pattern.permute.xlu0 0
            %940 = vperm.xlu0 %939, %v890
            %v941 = vpop.permute.xlu0 %940
            %944 = vset.pattern.permute.xlu0 0
            %945 = vperm.xlu0 %944, %v891
            %v946 = vpop.permute.xlu0 %945
            %949 = vset.pattern.permute.xlu0 0
            %950 = vperm.xlu0 %949, %v892
            %v951 = vpop.permute.xlu0 %950
            %954 = vset.pattern.permute.xlu0 0
            %955 = vperm.xlu0 %954, %v893
            %v956 = vpop.permute.xlu0 %955
            %959 = vset.pattern.permute.xlu0 0
            %960 = vperm.xlu0 %959, %v894
            %v961 = vpop.permute.xlu0 %960
            %964 = vset.pattern.permute.xlu0 0
            %965 = vperm.xlu0 %964, %v895
            %v966 = vpop.permute.xlu0 %965
            %969 = vset.pattern.permute.xlu0 0
            %970 = vperm.xlu0 %969, %v896
            %v971 = vpop.permute.xlu0 %970
            %974 = vset.pattern.permute.xlu0 0
            %975 = vperm.xlu0 %974, %v897
            %v976 = vpop.permute.xlu0 %975
            %v978 = vmul.f32 %v866, %v901
            %v979 = vmul.f32 %v867, %v906
            %v980 = vmul.f32 %v868, %v911
            %v981 = vmul.f32 %v869, %v916
            %v982 = vmul.f32 %v870, %v921
            %v983 = vmul.f32 %v871, %v926
            %v984 = vmul.f32 %v872, %v931
            %v985 = vmul.f32 %v873, %v936
            %v986 = vmul.f32 %v874, %v941
            %v987 = vmul.f32 %v875, %v946
            %v988 = vmul.f32 %v876, %v951
            %v989 = vmul.f32 %v877, %v956
            %v990 = vmul.f32 %v878, %v961
            %v991 = vmul.f32 %v879, %v966
            %v992 = vmul.f32 %v880, %v971
            %v993 = vmul.f32 %v881, %v976
            %v994 = vpack.c.bf16 %v979, %v978
            %v995 = vpack.c.bf16 %v981, %v980
            %v996 = vpack.c.bf16 %v983, %v982
            %v997 = vpack.c.bf16 %v985, %v984
            %v998 = vpack.c.bf16 %v987, %v986
            %v999 = vpack.c.bf16 %v989, %v988
            %v1000 = vpack.c.bf16 %v991, %v990
            %v1001 = vpack.c.bf16 %v993, %v992
            %v1010 = vunpack.c.l.b16 %v994
            %v1011 = vunpack.c.h.b16 %v994
            %v1012 = vunpack.c.l.b16 %v995
            %v1013 = vunpack.c.h.b16 %v995
            %v1014 = vunpack.c.l.b16 %v996
            %v1015 = vunpack.c.h.b16 %v996
            %v1016 = vunpack.c.l.b16 %v997
            %v1017 = vunpack.c.h.b16 %v997
            %v1018 = vunpack.c.l.b16 %v998
            %v1019 = vunpack.c.h.b16 %v998
            %v1020 = vunpack.c.l.b16 %v999
            %v1021 = vunpack.c.h.b16 %v999
            %v1022 = vunpack.c.l.b16 %v1000
            %v1023 = vunpack.c.h.b16 %v1000
            %v1024 = vunpack.c.l.b16 %v1001
            %v1025 = vunpack.c.h.b16 %v1001
            %v1026 = vpack.c.b16 %v1010, %v1010
            %v1027 = vpack.c.b16 %v1011, %v1011
            %v1028 = vpack.c.b16 %v1012, %v1012
            %v1029 = vpack.c.b16 %v1013, %v1013
            %v1030 = vpack.c.b16 %v1014, %v1014
            %v1031 = vpack.c.b16 %v1015, %v1015
            %v1032 = vpack.c.b16 %v1016, %v1016
            %v1033 = vpack.c.b16 %v1017, %v1017
            %v1034 = vpack.c.b16 %v1018, %v1018
            %v1035 = vpack.c.b16 %v1019, %v1019
            %v1036 = vpack.c.b16 %v1020, %v1020
            %v1037 = vpack.c.b16 %v1021, %v1021
            %v1038 = vpack.c.b16 %v1022, %v1022
            %v1039 = vpack.c.b16 %v1023, %v1023
            %v1040 = vpack.c.b16 %v1024, %v1024
            %v1041 = vpack.c.b16 %v1025, %v1025
            %s1058 = sshra.s32 %s311, 3
            %s1059 = sand.u32 %s311, 7
            %s1060 = smul.addr %s1058, 4
            %s1061 = scalar_lea.vmem [#allocation2], %s1060
            %1062 = vst [vmem:[%s1061] sm:$0xf] %v1026
            %1063 = vst [vmem:[%s1061 + $0x4] sm:$0xf] %v1027
            %1064 = vst [vmem:[%s1061 + $0x8] sm:$0xf] %v1028
            %1065 = vst [vmem:[%s1061 + $0xc] sm:$0xf] %v1029
            %1066 = vst [vmem:[%s1061 + $0x10] sm:$0xf] %v1030
            %1067 = vst [vmem:[%s1061 + $0x14] sm:$0xf] %v1031
            %1068 = vst [vmem:[%s1061 + $0x18] sm:$0xf] %v1032
            %1069 = vst [vmem:[%s1061 + $0x1c] sm:$0xf] %v1033
            %1070 = vst [vmem:[%s1061 + $0x20] sm:$0xf] %v1034
            %1071 = vst [vmem:[%s1061 + $0x24] sm:$0xf] %v1035
            %1072 = vst [vmem:[%s1061 + $0x28] sm:$0xf] %v1036
            %1073 = vst [vmem:[%s1061 + $0x2c] sm:$0xf] %v1037
            %1074 = vst [vmem:[%s1061 + $0x30] sm:$0xf] %v1038
            %1075 = vst [vmem:[%s1061 + $0x34] sm:$0xf] %v1039
            %1076 = vst [vmem:[%s1061 + $0x38] sm:$0xf] %v1040
            %1077 = vst [vmem:[%s1061 + $0x3c] sm:$0xf] %v1041
          $region57: #{tpu_custom_call.1} parent=52 // pred_fallthru
            _
          %p1078 = scmp.eq.s32.totalorder %s22, 2
          // Predicated region
          $region58: #{tpu_custom_call.1} parent=52 // pred_check
            %p1079 = pneg %p1078
          $region59: #{tpu_custom_call.1} parent=52 // pred_check_branch
            %1081 = sbr.rel (%p1079) target = $region61
          $region60: #{tpu_custom_call.1} parent=52 // pred_region
            %v1082 = vpack.c.bf16 %v803, %v800
            %v1083 = vpack.c.bf16 %v811, %v808
            %v1084 = vpack.c.bf16 %v819, %v816
            %v1085 = vpack.c.bf16 %v827, %v824
            %v1086 = vpack.c.bf16 %v835, %v832
            %v1087 = vpack.c.bf16 %v843, %v840
            %v1088 = vpack.c.bf16 %v851, %v848
            %v1089 = vpack.c.bf16 %v859, %v856
            %v1098 = vunpack.c.l.b16 %v1082
            %v1099 = vunpack.c.h.b16 %v1082
            %v1100 = vunpack.c.l.b16 %v1083
            %v1101 = vunpack.c.h.b16 %v1083
            %v1102 = vunpack.c.l.b16 %v1084
            %v1103 = vunpack.c.h.b16 %v1084
            %v1104 = vunpack.c.l.b16 %v1085
            %v1105 = vunpack.c.h.b16 %v1085
            %v1106 = vunpack.c.l.b16 %v1086
            %v1107 = vunpack.c.h.b16 %v1086
            %v1108 = vunpack.c.l.b16 %v1087
            %v1109 = vunpack.c.h.b16 %v1087
            %v1110 = vunpack.c.l.b16 %v1088
            %v1111 = vunpack.c.h.b16 %v1088
            %v1112 = vunpack.c.l.b16 %v1089
            %v1113 = vunpack.c.h.b16 %v1089
            %v1114 = vpack.c.b16 %v1098, %v1098
            %v1115 = vpack.c.b16 %v1099, %v1099
            %v1116 = vpack.c.b16 %v1100, %v1100
            %v1117 = vpack.c.b16 %v1101, %v1101
            %v1118 = vpack.c.b16 %v1102, %v1102
            %v1119 = vpack.c.b16 %v1103, %v1103
            %v1120 = vpack.c.b16 %v1104, %v1104
            %v1121 = vpack.c.b16 %v1105, %v1105
            %v1122 = vpack.c.b16 %v1106, %v1106
            %v1123 = vpack.c.b16 %v1107, %v1107
            %v1124 = vpack.c.b16 %v1108, %v1108
            %v1125 = vpack.c.b16 %v1109, %v1109
            %v1126 = vpack.c.b16 %v1110, %v1110
            %v1127 = vpack.c.b16 %v1111, %v1111
            %v1128 = vpack.c.b16 %v1112, %v1112
            %v1129 = vpack.c.b16 %v1113, %v1113
            %1146 = vst [vmem:[#allocation4] sm:$0xf] %v1114
            %1147 = vst [vmem:[#allocation4 + $0x4] sm:$0xf] %v1115
            %1148 = vst [vmem:[#allocation4 + $0x8] sm:$0xf] %v1116
            %1149 = vst [vmem:[#allocation4 + $0xc] sm:$0xf] %v1117
            %1150 = vst [vmem:[#allocation4 + $0x10] sm:$0xf] %v1118
            %1151 = vst [vmem:[#allocation4 + $0x14] sm:$0xf] %v1119
            %1152 = vst [vmem:[#allocation4 + $0x18] sm:$0xf] %v1120
            %1153 = vst [vmem:[#allocation4 + $0x1c] sm:$0xf] %v1121
            %1154 = vst [vmem:[#allocation4 + $0x20] sm:$0xf] %v1122
            %1155 = vst [vmem:[#allocation4 + $0x24] sm:$0xf] %v1123
            %1156 = vst [vmem:[#allocation4 + $0x28] sm:$0xf] %v1124
            %1157 = vst [vmem:[#allocation4 + $0x2c] sm:$0xf] %v1125
            %1158 = vst [vmem:[#allocation4 + $0x30] sm:$0xf] %v1126
            %1159 = vst [vmem:[#allocation4 + $0x34] sm:$0xf] %v1127
            %1160 = vst [vmem:[#allocation4 + $0x38] sm:$0xf] %v1128
            %1161 = vst [vmem:[#allocation4 + $0x3c] sm:$0xf] %v1129
          $region61: #{tpu_custom_call.1} parent=52 // pred_fallthru
            _
        $region53: #{tpu_custom_call.1} parent=39 // pred_fallthru
          _
        %p1162 = scmp.ne.s32.totalorder %s344, 0
        // Predicated region
        $region62: #{tpu_custom_call.1} parent=39 // pred_check
          %p1163 = pneg %p1162
        $region63: #{tpu_custom_call.1} parent=39 // pred_check_branch
          %1165 = sbr.rel (%p1163) target = $region65
        $region64: #{tpu_custom_call.1} parent=39 // pred_region
          %v1166 = vld [vmem:[%s287] sm:$0xf]
          %v1167 = vld [vmem:[%s287 + $0x4] sm:$0xf]
          %v1168 = vld [vmem:[%s287 + $0x8] sm:$0xf]
          %v1169 = vld [vmem:[%s287 + $0xc] sm:$0xf]
          %v1170 = vld [vmem:[%s287 + $0x10] sm:$0xf]
          %v1171 = vld [vmem:[%s287 + $0x14] sm:$0xf]
          %v1172 = vld [vmem:[%s287 + $0x18] sm:$0xf]
          %v1173 = vld [vmem:[%s287 + $0x1c] sm:$0xf]
          %v1174 = vld [vmem:[%s287 + $0x20] sm:$0xf]
          %v1175 = vld [vmem:[%s287 + $0x24] sm:$0xf]
          %v1176 = vld [vmem:[%s287 + $0x28] sm:$0xf]
          %v1177 = vld [vmem:[%s287 + $0x2c] sm:$0xf]
          %v1178 = vld [vmem:[%s287 + $0x30] sm:$0xf]
          %v1179 = vld [vmem:[%s287 + $0x34] sm:$0xf]
          %v1180 = vld [vmem:[%s287 + $0x38] sm:$0xf]
          %v1181 = vld [vmem:[%s287 + $0x3c] sm:$0xf]
          %v1182 = vld [vmem:[#allocation2] sm:$0xf]
          %v1183 = vld [vmem:[#allocation2 + $0x4] sm:$0xf]
          %v1184 = vld [vmem:[#allocation2 + $0x8] sm:$0xf]
          %v1185 = vld [vmem:[#allocation2 + $0xc] sm:$0xf]
          %v1186 = vld [vmem:[#allocation2 + $0x10] sm:$0xf]
          %v1187 = vld [vmem:[#allocation2 + $0x14] sm:$0xf]
          %v1188 = vld [vmem:[#allocation2 + $0x18] sm:$0xf]
          %v1189 = vld [vmem:[#allocation2 + $0x1c] sm:$0xf]
          %v1190 = vld [vmem:[#allocation2 + $0x20] sm:$0xf]
          %v1191 = vld [vmem:[#allocation2 + $0x24] sm:$0xf]
          %v1192 = vld [vmem:[#allocation2 + $0x28] sm:$0xf]
          %v1193 = vld [vmem:[#allocation2 + $0x2c] sm:$0xf]
          %v1194 = vld [vmem:[#allocation2 + $0x30] sm:$0xf]
          %v1195 = vld [vmem:[#allocation2 + $0x34] sm:$0xf]
          %v1196 = vld [vmem:[#allocation2 + $0x38] sm:$0xf]
          %v1197 = vld [vmem:[#allocation2 + $0x3c] sm:$0xf]
          %v1214 = vunpack.c.l.b16 %v1166
          %v1215 = vunpack.c.l.b16 %v1167
          %v1216 = vunpack.c.l.b16 %v1168
          %v1217 = vunpack.c.l.b16 %v1169
          %v1218 = vunpack.c.l.b16 %v1170
          %v1219 = vunpack.c.l.b16 %v1171
          %v1220 = vunpack.c.l.b16 %v1172
          %v1221 = vunpack.c.l.b16 %v1173
          %v1222 = vunpack.c.l.b16 %v1174
          %v1223 = vunpack.c.l.b16 %v1175
          %v1224 = vunpack.c.l.b16 %v1176
          %v1225 = vunpack.c.l.b16 %v1177
          %v1226 = vunpack.c.l.b16 %v1178
          %v1227 = vunpack.c.l.b16 %v1179
          %v1228 = vunpack.c.l.b16 %v1180
          %v1229 = vunpack.c.l.b16 %v1181
          %v1230 = vpack.c.b16 %v1215, %v1214
          %v1231 = vpack.c.b16 %v1217, %v1216
          %v1232 = vpack.c.b16 %v1219, %v1218
          %v1233 = vpack.c.b16 %v1221, %v1220
          %v1234 = vpack.c.b16 %v1223, %v1222
          %v1235 = vpack.c.b16 %v1225, %v1224
          %v1236 = vpack.c.b16 %v1227, %v1226
          %v1237 = vpack.c.b16 %v1229, %v1228
          %v1262 = vunpack.c.l.b16 %v1182
          %v1263 = vunpack.c.l.b16 %v1183
          %v1264 = vunpack.c.l.b16 %v1184
          %v1265 = vunpack.c.l.b16 %v1185
          %v1266 = vunpack.c.l.b16 %v1186
          %v1267 = vunpack.c.l.b16 %v1187
          %v1268 = vunpack.c.l.b16 %v1188
          %v1269 = vunpack.c.l.b16 %v1189
          %v1270 = vunpack.c.l.b16 %v1190
          %v1271 = vunpack.c.l.b16 %v1191
          %v1272 = vunpack.c.l.b16 %v1192
          %v1273 = vunpack.c.l.b16 %v1193
          %v1274 = vunpack.c.l.b16 %v1194
          %v1275 = vunpack.c.l.b16 %v1195
          %v1276 = vunpack.c.l.b16 %v1196
          %v1277 = vunpack.c.l.b16 %v1197
          %v1278 = vpack.c.b16 %v1263, %v1262
          %v1279 = vpack.c.b16 %v1265, %v1264
          %v1280 = vpack.c.b16 %v1267, %v1266
          %v1281 = vpack.c.b16 %v1269, %v1268
          %v1282 = vpack.c.b16 %v1271, %v1270
          %v1283 = vpack.c.b16 %v1273, %v1272
          %v1284 = vpack.c.b16 %v1275, %v1274
          %v1285 = vpack.c.b16 %v1277, %v1276
          %1294 = vmatprep.subr.bf16.mxu0 0
          %1295 = vmatpush1.bf16.msra.mxu0 %v1285
          %1296 = vmatprep.subr.bf16.mxu0 0
          %1297 = vmatpush1.bf16.msra.mxu0 %v1284
          %1298 = vmatprep.subr.bf16.mxu0 0
          %1299 = vmatpush1.bf16.msra.mxu0 %v1283
          %1300 = vmatprep.subr.bf16.mxu0 0
          %1301 = vmatpush1.bf16.msra.mxu0 %v1282
          %1302 = vmatprep.subr.bf16.mxu0 0
          %1303 = vmatpush1.bf16.msra.mxu0 %v1281
          %1304 = vmatprep.subr.bf16.mxu0 0
          %1305 = vmatpush1.bf16.msra.mxu0 %v1280
          %1306 = vmatprep.subr.bf16.mxu0 0
          %1307 = vmatpush1.bf16.msra.mxu0 %v1279
          %1308 = vmatprep.subr.bf16.mxu0 0
          %1309 = vmatpush1.bf16.msra.mxu0 %v1278
          %1310 = vmatprep.subr.bf16.mxu0 0
          %1311 = vmatpush2.bf16.msra.mxu0 0
          %1312 = vmatprep.subr.bf16.mxu0 0
          %1313 = vmatpush2.bf16.msra.mxu0 0
          %1314 = vmatprep.subr.bf16.mxu0 0
          %1315 = vmatpush2.bf16.msra.mxu0 0
          %1316 = vmatprep.subr.bf16.mxu0 0
          %1317 = vmatpush2.bf16.msra.mxu0 0
          %1318 = vmatprep.subr.bf16.mxu0 0
          %1319 = vmatpush2.bf16.msra.mxu0 0
          %1320 = vmatprep.subr.bf16.mxu0 0
          %1321 = vmatpush2.bf16.msra.mxu0 0
          %1322 = vmatprep.subr.bf16.mxu0 0
          %1323 = vmatpush2.bf16.msra.mxu0 0
          %1324 = vmatprep.subr.bf16.mxu0 0
          %1325 = vmatpush2.bf16.msra.mxu0 0
          %1326 = vmatprep.mubr.bf16.mxu0 0
          %1327 = vmatmul.mubr.bf16.gmra.mxu0 %v1230
          %v1328 = vpop.f32.mrf.mxu0
          %v1329 = vadd.f32 0.0, %v1328
          %v1330 = vpop.f32.mrf.mxu0
          %v1331 = vpop.f32.mrf.mxu0
          %v1332 = vadd.f32 0.0, %v1331
          %v1333 = vpop.f32.mrf.mxu0
          %1334 = vmatprep.mubr.bf16.mxu0 0
          %1335 = vmatmul.mubr.bf16.gmra.mxu0 %v1231
          %v1336 = vpop.f32.mrf.mxu0
          %v1337 = vadd.f32 0.0, %v1336
          %v1338 = vpop.f32.mrf.mxu0
          %v1339 = vpop.f32.mrf.mxu0
          %v1340 = vadd.f32 0.0, %v1339
          %v1341 = vpop.f32.mrf.mxu0
          %1342 = vmatprep.mubr.bf16.mxu0 0
          %1343 = vmatmul.mubr.bf16.gmra.mxu0 %v1232
          %v1344 = vpop.f32.mrf.mxu0
          %v1345 = vadd.f32 0.0, %v1344
          %v1346 = vpop.f32.mrf.mxu0
          %v1347 = vpop.f32.mrf.mxu0
          %v1348 = vadd.f32 0.0, %v1347
          %v1349 = vpop.f32.mrf.mxu0
          %1350 = vmatprep.mubr.bf16.mxu0 0
          %1351 = vmatmul.mubr.bf16.gmra.mxu0 %v1233
          %v1352 = vpop.f32.mrf.mxu0
          %v1353 = vadd.f32 0.0, %v1352
          %v1354 = vpop.f32.mrf.mxu0
          %v1355 = vpop.f32.mrf.mxu0
          %v1356 = vadd.f32 0.0, %v1355
          %v1357 = vpop.f32.mrf.mxu0
          %1358 = vmatprep.mubr.bf16.mxu0 0
          %1359 = vmatmul.mubr.bf16.gmra.mxu0 %v1234
          %v1360 = vpop.f32.mrf.mxu0
          %v1361 = vadd.f32 0.0, %v1360
          %v1362 = vpop.f32.mrf.mxu0
          %v1363 = vpop.f32.mrf.mxu0
          %v1364 = vadd.f32 0.0, %v1363
          %v1365 = vpop.f32.mrf.mxu0
          %1366 = vmatprep.mubr.bf16.mxu0 0
          %1367 = vmatmul.mubr.bf16.gmra.mxu0 %v1235
          %v1368 = vpop.f32.mrf.mxu0
          %v1369 = vadd.f32 0.0, %v1368
          %v1370 = vpop.f32.mrf.mxu0
          %v1371 = vpop.f32.mrf.mxu0
          %v1372 = vadd.f32 0.0, %v1371
          %v1373 = vpop.f32.mrf.mxu0
          %1374 = vmatprep.mubr.bf16.mxu0 0
          %1375 = vmatmul.mubr.bf16.gmra.mxu0 %v1236
          %v1376 = vpop.f32.mrf.mxu0
          %v1377 = vadd.f32 0.0, %v1376
          %v1378 = vpop.f32.mrf.mxu0
          %v1379 = vpop.f32.mrf.mxu0
          %v1380 = vadd.f32 0.0, %v1379
          %v1381 = vpop.f32.mrf.mxu0
          %1382 = vmatprep.mubr.bf16.mxu0 0
          %1383 = vmatmul.mubr.bf16.gmra.mxu0 %v1237
          %v1384 = vpop.f32.mrf.mxu0
          %v1385 = vadd.f32 0.0, %v1384
          %v1386 = vpop.f32.mrf.mxu0
          %v1387 = vpop.f32.mrf.mxu0
          %v1388 = vadd.f32 0.0, %v1387
          %v1389 = vpop.f32.mrf.mxu0
          %1390 = vdwg.mxu0
          %v1391 = vld [vmem:[%s301] sm:$0xff]
          %v1392 = vld [vmem:[%s301 + $0x8] sm:$0xff]
          %v1393 = vld [vmem:[%s301 + $0x10] sm:$0xff]
          %v1394 = vld [vmem:[%s301 + $0x18] sm:$0xff]
          %v1395 = vld [vmem:[%s301 + $0x20] sm:$0xff]
          %v1396 = vld [vmem:[%s301 + $0x28] sm:$0xff]
          %v1397 = vld [vmem:[%s301 + $0x30] sm:$0xff]
          %v1398 = vld [vmem:[%s301 + $0x38] sm:$0xff]
          %v1399 = vld [vmem:[%s301 + $0x40] sm:$0xff]
          %v1400 = vld [vmem:[%s301 + $0x48] sm:$0xff]
          %v1401 = vld [vmem:[%s301 + $0x50] sm:$0xff]
          %v1402 = vld [vmem:[%s301 + $0x58] sm:$0xff]
          %v1403 = vld [vmem:[%s301 + $0x60] sm:$0xff]
          %v1404 = vld [vmem:[%s301 + $0x68] sm:$0xff]
          %v1405 = vld [vmem:[%s301 + $0x70] sm:$0xff]
          %v1406 = vld [vmem:[%s301 + $0x78] sm:$0xff]
          %1408 = vset.pattern.permute.xlu0 0
          %1409 = vperm.xlu0 %1408, %v1391
          %v1410 = vpop.permute.xlu0 %1409
          %1413 = vset.pattern.permute.xlu0 0
          %1414 = vperm.xlu0 %1413, %v1392
          %v1415 = vpop.permute.xlu0 %1414
          %1418 = vset.pattern.permute.xlu0 0
          %1419 = vperm.xlu0 %1418, %v1393
          %v1420 = vpop.permute.xlu0 %1419
          %1423 = vset.pattern.permute.xlu0 0
          %1424 = vperm.xlu0 %1423, %v1394
          %v1425 = vpop.permute.xlu0 %1424
          %1428 = vset.pattern.permute.xlu0 0
          %1429 = vperm.xlu0 %1428, %v1395
          %v1430 = vpop.permute.xlu0 %1429
          %1433 = vset.pattern.permute.xlu0 0
          %1434 = vperm.xlu0 %1433, %v1396
          %v1435 = vpop.permute.xlu0 %1434
          %1438 = vset.pattern.permute.xlu0 0
          %1439 = vperm.xlu0 %1438, %v1397
          %v1440 = vpop.permute.xlu0 %1439
          %1443 = vset.pattern.permute.xlu0 0
          %1444 = vperm.xlu0 %1443, %v1398
          %v1445 = vpop.permute.xlu0 %1444
          %1448 = vset.pattern.permute.xlu0 0
          %1449 = vperm.xlu0 %1448, %v1399
          %v1450 = vpop.permute.xlu0 %1449
          %1453 = vset.pattern.permute.xlu0 0
          %1454 = vperm.xlu0 %1453, %v1400
          %v1455 = vpop.permute.xlu0 %1454
          %1458 = vset.pattern.permute.xlu0 0
          %1459 = vperm.xlu0 %1458, %v1401
          %v1460 = vpop.permute.xlu0 %1459
          %1463 = vset.pattern.permute.xlu0 0
          %1464 = vperm.xlu0 %1463, %v1402
          %v1465 = vpop.permute.xlu0 %1464
          %1468 = vset.pattern.permute.xlu0 0
          %1469 = vperm.xlu0 %1468, %v1403
          %v1470 = vpop.permute.xlu0 %1469
          %1473 = vset.pattern.permute.xlu0 0
          %1474 = vperm.xlu0 %1473, %v1404
          %v1475 = vpop.permute.xlu0 %1474
          %1478 = vset.pattern.permute.xlu0 0
          %1479 = vperm.xlu0 %1478, %v1405
          %v1480 = vpop.permute.xlu0 %1479
          %1483 = vset.pattern.permute.xlu0 0
          %1484 = vperm.xlu0 %1483, %v1406
          %v1485 = vpop.permute.xlu0 %1484
          %v1487 = vmul.f32 %v1329, %v1410
          %v1488 = vmul.f32 %v1332, %v1415
          %v1489 = vmul.f32 %v1337, %v1420
          %v1490 = vmul.f32 %v1340, %v1425
          %v1491 = vmul.f32 %v1345, %v1430
          %v1492 = vmul.f32 %v1348, %v1435
          %v1493 = vmul.f32 %v1353, %v1440
          %v1494 = vmul.f32 %v1356, %v1445
          %v1495 = vmul.f32 %v1361, %v1450
          %v1496 = vmul.f32 %v1364, %v1455
          %v1497 = vmul.f32 %v1369, %v1460
          %v1498 = vmul.f32 %v1372, %v1465
          %v1499 = vmul.f32 %v1377, %v1470
          %v1500 = vmul.f32 %v1380, %v1475
          %v1501 = vmul.f32 %v1385, %v1480
          %v1502 = vmul.f32 %v1388, %v1485
          %v1503 = vpack.c.bf16 %v1488, %v1487
          %v1504 = vpack.c.bf16 %v1490, %v1489
          %v1505 = vpack.c.bf16 %v1492, %v1491
          %v1506 = vpack.c.bf16 %v1494, %v1493
          %v1507 = vpack.c.bf16 %v1496, %v1495
          %v1508 = vpack.c.bf16 %v1498, %v1497
          %v1509 = vpack.c.bf16 %v1500, %v1499
          %v1510 = vpack.c.bf16 %v1502, %v1501
          %v1511 = vld [vmem:[%s293] sm:$0xf]
          %v1512 = vld [vmem:[%s293 + $0x4] sm:$0xf]
          %v1513 = vld [vmem:[%s293 + $0x8] sm:$0xf]
          %v1514 = vld [vmem:[%s293 + $0xc] sm:$0xf]
          %v1515 = vld [vmem:[%s293 + $0x10] sm:$0xf]
          %v1516 = vld [vmem:[%s293 + $0x14] sm:$0xf]
          %v1517 = vld [vmem:[%s293 + $0x18] sm:$0xf]
          %v1518 = vld [vmem:[%s293 + $0x1c] sm:$0xf]
          %v1519 = vld [vmem:[%s293 + $0x20] sm:$0xf]
          %v1520 = vld [vmem:[%s293 + $0x24] sm:$0xf]
          %v1521 = vld [vmem:[%s293 + $0x28] sm:$0xf]
          %v1522 = vld [vmem:[%s293 + $0x2c] sm:$0xf]
          %v1523 = vld [vmem:[%s293 + $0x30] sm:$0xf]
          %v1524 = vld [vmem:[%s293 + $0x34] sm:$0xf]
          %v1525 = vld [vmem:[%s293 + $0x38] sm:$0xf]
          %v1526 = vld [vmem:[%s293 + $0x3c] sm:$0xf]
          %v1527 = vld [vmem:[%s296] sm:$0x1]
          %v1529 = vlaneseq
          %v1530 = vshrl.u32 %v1529, 7
          %v1531 = vsub.s32 0, %v1530
          %v1532 = vrot.slane %v1527, %v1531
          %v1550 = vunpack.c.l.b16 %v1511
          %v1551 = vunpack.c.l.b16 %v1512
          %v1552 = vunpack.c.l.b16 %v1513
          %v1553 = vunpack.c.l.b16 %v1514
          %v1554 = vunpack.c.l.b16 %v1515
          %v1555 = vunpack.c.l.b16 %v1516
          %v1556 = vunpack.c.l.b16 %v1517
          %v1557 = vunpack.c.l.b16 %v1518
          %v1558 = vunpack.c.l.b16 %v1519
          %v1559 = vunpack.c.l.b16 %v1520
          %v1560 = vunpack.c.l.b16 %v1521
          %v1561 = vunpack.c.l.b16 %v1522
          %v1562 = vunpack.c.l.b16 %v1523
          %v1563 = vunpack.c.l.b16 %v1524
          %v1564 = vunpack.c.l.b16 %v1525
          %v1565 = vunpack.c.l.b16 %v1526
          %v1566 = vpack.c.b16 %v1551, %v1550
          %v1567 = vpack.c.b16 %v1553, %v1552
          %v1568 = vpack.c.b16 %v1555, %v1554
          %v1569 = vpack.c.b16 %v1557, %v1556
          %v1570 = vpack.c.b16 %v1559, %v1558
          %v1571 = vpack.c.b16 %v1561, %v1560
          %v1572 = vpack.c.b16 %v1563, %v1562
          %v1573 = vpack.c.b16 %v1565, %v1564
          %1582 = vmatprep.subr.bf16.mxu0 0
          %1583 = vmatpush1.bf16.msra.mxu0 %v1573
          %1584 = vmatprep.subr.bf16.mxu0 0
          %1585 = vmatpush1.bf16.msra.mxu0 %v1572
          %1586 = vmatprep.subr.bf16.mxu0 0
          %1587 = vmatpush1.bf16.msra.mxu0 %v1571
          %1588 = vmatprep.subr.bf16.mxu0 0
          %1589 = vmatpush1.bf16.msra.mxu0 %v1570
          %1590 = vmatprep.subr.bf16.mxu0 0
          %1591 = vmatpush1.bf16.msra.mxu0 %v1569
          %1592 = vmatprep.subr.bf16.mxu0 0
          %1593 = vmatpush1.bf16.msra.mxu0 %v1568
          %1594 = vmatprep.subr.bf16.mxu0 0
          %1595 = vmatpush1.bf16.msra.mxu0 %v1567
          %1596 = vmatprep.subr.bf16.mxu0 0
          %1597 = vmatpush1.bf16.msra.mxu0 %v1566
          %1598 = vmatprep.subr.bf16.mxu0 0
          %1599 = vmatpush2.bf16.msra.mxu0 0
          %1600 = vmatprep.subr.bf16.mxu0 0
          %1601 = vmatpush2.bf16.msra.mxu0 0
          %1602 = vmatprep.subr.bf16.mxu0 0
          %1603 = vmatpush2.bf16.msra.mxu0 0
          %1604 = vmatprep.subr.bf16.mxu0 0
          %1605 = vmatpush2.bf16.msra.mxu0 0
          %1606 = vmatprep.subr.bf16.mxu0 0
          %1607 = vmatpush2.bf16.msra.mxu0 0
          %1608 = vmatprep.subr.bf16.mxu0 0
          %1609 = vmatpush2.bf16.msra.mxu0 0
          %1610 = vmatprep.subr.bf16.mxu0 0
          %1611 = vmatpush2.bf16.msra.mxu0 0
          %1612 = vmatprep.subr.bf16.mxu0 0
          %1613 = vmatpush2.bf16.msra.mxu0 0
          %1614 = vmatprep.mubr.bf16.mxu0 0
          %1615 = vmatmul.mubr.bf16.gmra.mxu0 %v1503
          %v1616 = vpop.f32.mrf.mxu0
          %v1617 = vadd.f32 %v1532, %v1616
          %v1618 = vpop.f32.mrf.mxu0
          %v1619 = vpop.f32.mrf.mxu0
          %v1620 = vadd.f32 %v1532, %v1619
          %v1621 = vpop.f32.mrf.mxu0
          %1622 = vmatprep.mubr.bf16.mxu0 0
          %1623 = vmatmul.mubr.bf16.gmra.mxu0 %v1504
          %v1624 = vpop.f32.mrf.mxu0
          %v1625 = vadd.f32 %v1532, %v1624
          %v1626 = vpop.f32.mrf.mxu0
          %v1627 = vpop.f32.mrf.mxu0
          %v1628 = vadd.f32 %v1532, %v1627
          %v1629 = vpop.f32.mrf.mxu0
          %1630 = vmatprep.mubr.bf16.mxu0 0
          %1631 = vmatmul.mubr.bf16.gmra.mxu0 %v1505
          %v1632 = vpop.f32.mrf.mxu0
          %v1633 = vadd.f32 %v1532, %v1632
          %v1634 = vpop.f32.mrf.mxu0
          %v1635 = vpop.f32.mrf.mxu0
          %v1636 = vadd.f32 %v1532, %v1635
          %v1637 = vpop.f32.mrf.mxu0
          %1638 = vmatprep.mubr.bf16.mxu0 0
          %1639 = vmatmul.mubr.bf16.gmra.mxu0 %v1506
          %v1640 = vpop.f32.mrf.mxu0
          %v1641 = vadd.f32 %v1532, %v1640
          %v1642 = vpop.f32.mrf.mxu0
          %v1643 = vpop.f32.mrf.mxu0
          %v1644 = vadd.f32 %v1532, %v1643
          %v1645 = vpop.f32.mrf.mxu0
          %1646 = vmatprep.mubr.bf16.mxu0 0
          %1647 = vmatmul.mubr.bf16.gmra.mxu0 %v1507
          %v1648 = vpop.f32.mrf.mxu0
          %v1649 = vadd.f32 %v1532, %v1648
          %v1650 = vpop.f32.mrf.mxu0
          %v1651 = vpop.f32.mrf.mxu0
          %v1652 = vadd.f32 %v1532, %v1651
          %v1653 = vpop.f32.mrf.mxu0
          %1654 = vmatprep.mubr.bf16.mxu0 0
          %1655 = vmatmul.mubr.bf16.gmra.mxu0 %v1508
          %v1656 = vpop.f32.mrf.mxu0
          %v1657 = vadd.f32 %v1532, %v1656
          %v1658 = vpop.f32.mrf.mxu0
          %v1659 = vpop.f32.mrf.mxu0
          %v1660 = vadd.f32 %v1532, %v1659
          %v1661 = vpop.f32.mrf.mxu0
          %1662 = vmatprep.mubr.bf16.mxu0 0
          %1663 = vmatmul.mubr.bf16.gmra.mxu0 %v1509
          %v1664 = vpop.f32.mrf.mxu0
          %v1665 = vadd.f32 %v1532, %v1664
          %v1666 = vpop.f32.mrf.mxu0
          %v1667 = vpop.f32.mrf.mxu0
          %v1668 = vadd.f32 %v1532, %v1667
          %v1669 = vpop.f32.mrf.mxu0
          %1670 = vmatprep.mubr.bf16.mxu0 0
          %1671 = vmatmul.mubr.bf16.gmra.mxu0 %v1510
          %v1672 = vpop.f32.mrf.mxu0
          %v1673 = vadd.f32 %v1532, %v1672
          %v1674 = vpop.f32.mrf.mxu0
          %v1675 = vpop.f32.mrf.mxu0
          %v1676 = vadd.f32 %v1532, %v1675
          %v1677 = vpop.f32.mrf.mxu0
          %1678 = vdwg.mxu0
          %p1679 = scmp.lt.s32.totalorder %s22, 2
          // Predicated region
          $region66: #{tpu_custom_call.1} parent=64 // pred_check
            %p1680 = pneg %p1679
          $region67: #{tpu_custom_call.1} parent=64 // pred_check_branch
            %1682 = sbr.rel (%p1680) target = $region69
          $region68: #{tpu_custom_call.1} parent=64 // pred_region
            %v1683 = vmax.f32 %v1617, 0.0
            %v1684 = vmax.f32 %v1620, 0.0
            %v1685 = vmax.f32 %v1625, 0.0
            %v1686 = vmax.f32 %v1628, 0.0
            %v1687 = vmax.f32 %v1633, 0.0
            %v1688 = vmax.f32 %v1636, 0.0
            %v1689 = vmax.f32 %v1641, 0.0
            %v1690 = vmax.f32 %v1644, 0.0
            %v1691 = vmax.f32 %v1649, 0.0
            %v1692 = vmax.f32 %v1652, 0.0
            %v1693 = vmax.f32 %v1657, 0.0
            %v1694 = vmax.f32 %v1660, 0.0
            %v1695 = vmax.f32 %v1665, 0.0
            %v1696 = vmax.f32 %v1668, 0.0
            %v1697 = vmax.f32 %v1673, 0.0
            %v1698 = vmax.f32 %v1676, 0.0
            %v1699 = vld [vmem:[%s307] sm:$0xff]
            %v1700 = vld [vmem:[%s307 + $0x8] sm:$0xff]
            %v1701 = vld [vmem:[%s307 + $0x10] sm:$0xff]
            %v1702 = vld [vmem:[%s307 + $0x18] sm:$0xff]
            %v1703 = vld [vmem:[%s307 + $0x20] sm:$0xff]
            %v1704 = vld [vmem:[%s307 + $0x28] sm:$0xff]
            %v1705 = vld [vmem:[%s307 + $0x30] sm:$0xff]
            %v1706 = vld [vmem:[%s307 + $0x38] sm:$0xff]
            %v1707 = vld [vmem:[%s307 + $0x40] sm:$0xff]
            %v1708 = vld [vmem:[%s307 + $0x48] sm:$0xff]
            %v1709 = vld [vmem:[%s307 + $0x50] sm:$0xff]
            %v1710 = vld [vmem:[%s307 + $0x58] sm:$0xff]
            %v1711 = vld [vmem:[%s307 + $0x60] sm:$0xff]
            %v1712 = vld [vmem:[%s307 + $0x68] sm:$0xff]
            %v1713 = vld [vmem:[%s307 + $0x70] sm:$0xff]
            %v1714 = vld [vmem:[%s307 + $0x78] sm:$0xff]
            %1716 = vset.pattern.permute.xlu0 0
            %1717 = vperm.xlu0 %1716, %v1699
            %v1718 = vpop.permute.xlu0 %1717
            %1721 = vset.pattern.permute.xlu0 0
            %1722 = vperm.xlu0 %1721, %v1700
            %v1723 = vpop.permute.xlu0 %1722
            %1726 = vset.pattern.permute.xlu0 0
            %1727 = vperm.xlu0 %1726, %v1701
            %v1728 = vpop.permute.xlu0 %1727
            %1731 = vset.pattern.permute.xlu0 0
            %1732 = vperm.xlu0 %1731, %v1702
            %v1733 = vpop.permute.xlu0 %1732
            %1736 = vset.pattern.permute.xlu0 0
            %1737 = vperm.xlu0 %1736, %v1703
            %v1738 = vpop.permute.xlu0 %1737
            %1741 = vset.pattern.permute.xlu0 0
            %1742 = vperm.xlu0 %1741, %v1704
            %v1743 = vpop.permute.xlu0 %1742
            %1746 = vset.pattern.permute.xlu0 0
            %1747 = vperm.xlu0 %1746, %v1705
            %v1748 = vpop.permute.xlu0 %1747
            %1751 = vset.pattern.permute.xlu0 0
            %1752 = vperm.xlu0 %1751, %v1706
            %v1753 = vpop.permute.xlu0 %1752
            %1756 = vset.pattern.permute.xlu0 0
            %1757 = vperm.xlu0 %1756, %v1707
            %v1758 = vpop.permute.xlu0 %1757
            %1761 = vset.pattern.permute.xlu0 0
            %1762 = vperm.xlu0 %1761, %v1708
            %v1763 = vpop.permute.xlu0 %1762
            %1766 = vset.pattern.permute.xlu0 0
            %1767 = vperm.xlu0 %1766, %v1709
            %v1768 = vpop.permute.xlu0 %1767
            %1771 = vset.pattern.permute.xlu0 0
            %1772 = vperm.xlu0 %1771, %v1710
            %v1773 = vpop.permute.xlu0 %1772
            %1776 = vset.pattern.permute.xlu0 0
            %1777 = vperm.xlu0 %1776, %v1711
            %v1778 = vpop.permute.xlu0 %1777
            %1781 = vset.pattern.permute.xlu0 0
            %1782 = vperm.xlu0 %1781, %v1712
            %v1783 = vpop.permute.xlu0 %1782
            %1786 = vset.pattern.permute.xlu0 0
            %1787 = vperm.xlu0 %1786, %v1713
            %v1788 = vpop.permute.xlu0 %1787
            %1791 = vset.pattern.permute.xlu0 0
            %1792 = vperm.xlu0 %1791, %v1714
            %v1793 = vpop.permute.xlu0 %1792
            %v1795 = vmul.f32 %v1683, %v1718
            %v1796 = vmul.f32 %v1684, %v1723
            %v1797 = vmul.f32 %v1685, %v1728
            %v1798 = vmul.f32 %v1686, %v1733
            %v1799 = vmul.f32 %v1687, %v1738
            %v1800 = vmul.f32 %v1688, %v1743
            %v1801 = vmul.f32 %v1689, %v1748
            %v1802 = vmul.f32 %v1690, %v1753
            %v1803 = vmul.f32 %v1691, %v1758
            %v1804 = vmul.f32 %v1692, %v1763
            %v1805 = vmul.f32 %v1693, %v1768
            %v1806 = vmul.f32 %v1694, %v1773
            %v1807 = vmul.f32 %v1695, %v1778
            %v1808 = vmul.f32 %v1696, %v1783
            %v1809 = vmul.f32 %v1697, %v1788
            %v1810 = vmul.f32 %v1698, %v1793
            %v1811 = vpack.c.bf16 %v1796, %v1795
            %v1812 = vpack.c.bf16 %v1798, %v1797
            %v1813 = vpack.c.bf16 %v1800, %v1799
            %v1814 = vpack.c.bf16 %v1802, %v1801
            %v1815 = vpack.c.bf16 %v1804, %v1803
            %v1816 = vpack.c.bf16 %v1806, %v1805
            %v1817 = vpack.c.bf16 %v1808, %v1807
            %v1818 = vpack.c.bf16 %v1810, %v1809
            %v1827 = vunpack.c.l.b16 %v1811
            %v1828 = vunpack.c.h.b16 %v1811
            %v1829 = vunpack.c.l.b16 %v1812
            %v1830 = vunpack.c.h.b16 %v1812
            %v1831 = vunpack.c.l.b16 %v1813
            %v1832 = vunpack.c.h.b16 %v1813
            %v1833 = vunpack.c.l.b16 %v1814
            %v1834 = vunpack.c.h.b16 %v1814
            %v1835 = vunpack.c.l.b16 %v1815
            %v1836 = vunpack.c.h.b16 %v1815
            %v1837 = vunpack.c.l.b16 %v1816
            %v1838 = vunpack.c.h.b16 %v1816
            %v1839 = vunpack.c.l.b16 %v1817
            %v1840 = vunpack.c.h.b16 %v1817
            %v1841 = vunpack.c.l.b16 %v1818
            %v1842 = vunpack.c.h.b16 %v1818
            %v1843 = vpack.c.b16 %v1827, %v1827
            %v1844 = vpack.c.b16 %v1828, %v1828
            %v1845 = vpack.c.b16 %v1829, %v1829
            %v1846 = vpack.c.b16 %v1830, %v1830
            %v1847 = vpack.c.b16 %v1831, %v1831
            %v1848 = vpack.c.b16 %v1832, %v1832
            %v1849 = vpack.c.b16 %v1833, %v1833
            %v1850 = vpack.c.b16 %v1834, %v1834
            %v1851 = vpack.c.b16 %v1835, %v1835
            %v1852 = vpack.c.b16 %v1836, %v1836
            %v1853 = vpack.c.b16 %v1837, %v1837
            %v1854 = vpack.c.b16 %v1838, %v1838
            %v1855 = vpack.c.b16 %v1839, %v1839
            %v1856 = vpack.c.b16 %v1840, %v1840
            %v1857 = vpack.c.b16 %v1841, %v1841
            %v1858 = vpack.c.b16 %v1842, %v1842
            %s1875 = sshra.s32 %s311, 3
            %s1876 = sand.u32 %s311, 7
            %s1877 = smul.addr %s1875, 4
            %s1878 = scalar_lea.vmem [#allocation3], %s1877
            %1879 = vst [vmem:[%s1878] sm:$0xf] %v1843
            %1880 = vst [vmem:[%s1878 + $0x4] sm:$0xf] %v1844
            %1881 = vst [vmem:[%s1878 + $0x8] sm:$0xf] %v1845
            %1882 = vst [vmem:[%s1878 + $0xc] sm:$0xf] %v1846
            %1883 = vst [vmem:[%s1878 + $0x10] sm:$0xf] %v1847
            %1884 = vst [vmem:[%s1878 + $0x14] sm:$0xf] %v1848
            %1885 = vst [vmem:[%s1878 + $0x18] sm:$0xf] %v1849
            %1886 = vst [vmem:[%s1878 + $0x1c] sm:$0xf] %v1850
            %1887 = vst [vmem:[%s1878 + $0x20] sm:$0xf] %v1851
            %1888 = vst [vmem:[%s1878 + $0x24] sm:$0xf] %v1852
            %1889 = vst [vmem:[%s1878 + $0x28] sm:$0xf] %v1853
            %1890 = vst [vmem:[%s1878 + $0x2c] sm:$0xf] %v1854
            %1891 = vst [vmem:[%s1878 + $0x30] sm:$0xf] %v1855
            %1892 = vst [vmem:[%s1878 + $0x34] sm:$0xf] %v1856
            %1893 = vst [vmem:[%s1878 + $0x38] sm:$0xf] %v1857
            %1894 = vst [vmem:[%s1878 + $0x3c] sm:$0xf] %v1858
          $region69: #{tpu_custom_call.1} parent=64 // pred_fallthru
            _
          %p1895 = scmp.eq.s32.totalorder %s22, 2
          // Predicated region
          $region70: #{tpu_custom_call.1} parent=64 // pred_check
            %p1896 = pneg %p1895
          $region71: #{tpu_custom_call.1} parent=64 // pred_check_branch
            %1898 = sbr.rel (%p1896) target = $region73
          $region72: #{tpu_custom_call.1} parent=64 // pred_region
            %v1899 = vpack.c.bf16 %v1620, %v1617
            %v1900 = vpack.c.bf16 %v1628, %v1625
            %v1901 = vpack.c.bf16 %v1636, %v1633
            %v1902 = vpack.c.bf16 %v1644, %v1641
            %v1903 = vpack.c.bf16 %v1652, %v1649
            %v1904 = vpack.c.bf16 %v1660, %v1657
            %v1905 = vpack.c.bf16 %v1668, %v1665
            %v1906 = vpack.c.bf16 %v1676, %v1673
            %v1915 = vunpack.c.l.b16 %v1899
            %v1916 = vunpack.c.h.b16 %v1899
            %v1917 = vunpack.c.l.b16 %v1900
            %v1918 = vunpack.c.h.b16 %v1900
            %v1919 = vunpack.c.l.b16 %v1901
            %v1920 = vunpack.c.h.b16 %v1901
            %v1921 = vunpack.c.l.b16 %v1902
            %v1922 = vunpack.c.h.b16 %v1902
            %v1923 = vunpack.c.l.b16 %v1903
            %v1924 = vunpack.c.h.b16 %v1903
            %v1925 = vunpack.c.l.b16 %v1904
            %v1926 = vunpack.c.h.b16 %v1904
            %v1927 = vunpack.c.l.b16 %v1905
            %v1928 = vunpack.c.h.b16 %v1905
            %v1929 = vunpack.c.l.b16 %v1906
            %v1930 = vunpack.c.h.b16 %v1906
            %v1931 = vpack.c.b16 %v1915, %v1915
            %v1932 = vpack.c.b16 %v1916, %v1916
            %v1933 = vpack.c.b16 %v1917, %v1917
            %v1934 = vpack.c.b16 %v1918, %v1918
            %v1935 = vpack.c.b16 %v1919, %v1919
            %v1936 = vpack.c.b16 %v1920, %v1920
            %v1937 = vpack.c.b16 %v1921, %v1921
            %v1938 = vpack.c.b16 %v1922, %v1922
            %v1939 = vpack.c.b16 %v1923, %v1923
            %v1940 = vpack.c.b16 %v1924, %v1924
            %v1941 = vpack.c.b16 %v1925, %v1925
            %v1942 = vpack.c.b16 %v1926, %v1926
            %v1943 = vpack.c.b16 %v1927, %v1927
            %v1944 = vpack.c.b16 %v1928, %v1928
            %v1945 = vpack.c.b16 %v1929, %v1929
            %v1946 = vpack.c.b16 %v1930, %v1930
            %1963 = vst [vmem:[#allocation4] sm:$0xf] %v1931
            %1964 = vst [vmem:[#allocation4 + $0x4] sm:$0xf] %v1932
            %1965 = vst [vmem:[#allocation4 + $0x8] sm:$0xf] %v1933
            %1966 = vst [vmem:[#allocation4 + $0xc] sm:$0xf] %v1934
            %1967 = vst [vmem:[#allocation4 + $0x10] sm:$0xf] %v1935
            %1968 = vst [vmem:[#allocation4 + $0x14] sm:$0xf] %v1936
            %1969 = vst [vmem:[#allocation4 + $0x18] sm:$0xf] %v1937
            %1970 = vst [vmem:[#allocation4 + $0x1c] sm:$0xf] %v1938
            %1971 = vst [vmem:[#allocation4 + $0x20] sm:$0xf] %v1939
            %1972 = vst [vmem:[#allocation4 + $0x24] sm:$0xf] %v1940
            %1973 = vst [vmem:[#allocation4 + $0x28] sm:$0xf] %v1941
            %1974 = vst [vmem:[#allocation4 + $0x2c] sm:$0xf] %v1942
            %1975 = vst [vmem:[#allocation4 + $0x30] sm:$0xf] %v1943
            %1976 = vst [vmem:[#allocation4 + $0x34] sm:$0xf] %v1944
            %1977 = vst [vmem:[#allocation4 + $0x38] sm:$0xf] %v1945
            %1978 = vst [vmem:[#allocation4 + $0x3c] sm:$0xf] %v1946
          $region73: #{tpu_custom_call.1} parent=64 // pred_fallthru
            _
        $region65: #{tpu_custom_call.1} parent=39 // pred_fallthru
          _
        // Predicated region
        $region74: #{tpu_custom_call.1} parent=39 // pred_check
          %p1979 = pneg %p178
        $region75: #{tpu_custom_call.1} parent=39 // pred_check_branch
          %1981 = sbr.rel (%p1979) target = $region77
        $region76: #{tpu_custom_call.1} parent=39 // pred_region
          %s1982 = smul.u32 16, %s23
          %s1984 = ssub.s32 1024, 1024
          %1985 = vsyncadd [#allocation5], %s1984
          %s1986 = smul.addr %s1982, 64
          %s1987 = scalar_lea.hbm %s6, %s1986
          %s1988 = sshll.u32 [#allocation4], 4
          %s1989 = int_to_ptr.vmem [resolvable:$true] %s1988
          %1994 = dma.vmem_to_hbm [thread:$0]  %s1989, 1024, %s1987, [#allocation5], 64, 64, 4
        $region77: #{tpu_custom_call.1} parent=39 // pred_fallthru
          _
        // Predicated region
        $region78: #{tpu_custom_call.1} parent=39 // pred_check
          %p1995 = pneg %p178
        $region79: #{tpu_custom_call.1} parent=39 // pred_check_branch
          %1997 = sbr.rel (%p1995) target = $region81
        $region80: #{tpu_custom_call.1} parent=39 // pred_region
          %1998 = dma.done [#allocation5], 1024
        $region81: #{tpu_custom_call.1} parent=39 // pred_fallthru
          _
      $region40: #{tpu_custom_call.1} parent=5 // pred_fallthru
        _
      %p1999 = scmp.le.s32.totalorder 2, %s13
      // Predicated region
      $region82: #{tpu_custom_call.1} parent=5 // pred_check
        %p2000 = pneg %p1999
      $region83: #{tpu_custom_call.1} parent=5 // pred_check_branch
        %2002 = sbr.rel (%p2000) target = $region85
      $region84: #{tpu_custom_call.1} parent=5 // pred_region
        %s2003 = ssub.s32 %s13, 2
      $region85: #{tpu_custom_call.1} parent=5 // pred_fallthru
        _
    $region6: #{tpu_custom_call.1} parent=1 // loop_footer
      %s17 = sadd.s32 1, %s13
    $region7: #{tpu_custom_call.1} parent=1 // loop_footer_branch
      %12 = sbr.rel target = $region3
    $region8: #{tpu_custom_call.1} parent=1 // loop_exit
      _
    %2004 = vsyncpa [#allocation5], 1
    %s2005 = scalar_lea.sflag [#allocation5], 1
    %2006 = vsyncpa %s2005, 1

</llo_original>
